<compile_context>
chip_gen: v6e
topology: v6e:2x2x1
jax: 0.10.0
libtpu: 0.0.40
codegen_flags: <defaults>
</compile_context>

<pallas_src>
import functools

import jax
import jax.numpy as jnp
from jax import lax
from jax.experimental import pallas as pl
from jax.experimental.pallas import tpu as pltpu


# ----------------------------- in-kernel math helpers -----------------------------

def _erf(x):
    # Abramowitz & Stegun 7.1.26 rational approximation, |err| < 1.5e-7
    # (matches PyTorch's exact-erf nn.GELU within f32 precision).
    a1, a2, a3, a4, a5 = (0.254829592, -0.284496736, 1.421413741,
                          -1.453152027, 1.061405429)
    p = 0.3275911
    ax = jnp.abs(x)
    # divide routed to the EUP slot (frees VALU slots on the largest elementwise tensor)
    t = pl.reciprocal(1.0 + p * ax, approx=True)
    poly = ((((a5 * t + a4) * t + a3) * t + a2) * t + a1) * t
    y = 1.0 - poly * jnp.exp(-ax * ax)
    return jnp.where(x < 0, -y, y)


def _gelu_exact(x):
    return 0.5 * x * (1.0 + _erf(x * 0.7071067811865476))


def _layer_norm(v, g, b, eps=1e-5):
    mu = jnp.mean(v, axis=-1, keepdims=True)
    var = jnp.mean(jnp.square(v - mu), axis=-1, keepdims=True)
    return (v - mu) * lax.rsqrt(var + eps) * g + b


def _softmax_lastdim(s):
    # max-subtract, exp, sum, reciprocal-multiply; exp + rcp go to the EUP slot.
    s = s - jnp.max(s, axis=-1, keepdims=True)
    e = jnp.exp(s)
    return e * pl.reciprocal(jnp.sum(e, axis=-1, keepdims=True), approx=True)


# ----------------------------------- kernel ---------------------------------------

def _block_kernel(num_heads, head_dim, hid_chunk,
                  xq_ref, xkv_ref, ln1_g, ln1_b, wq, wk, wv,
                  w_proj, b_proj, ln2_g, ln2_b, w1, b1, w2, b2, o_ref):
    H, D = num_heads, head_dim
    _, TQ, C = xq_ref.shape
    _, N, _ = xkv_ref.shape
    hidden = w1.shape[1]
    bf16 = jnp.bfloat16

    xq = xq_ref[0].astype(jnp.float32)            # (TQ, C) rows this step produces
    xkv = xkv_ref[0].astype(jnp.float32)          # (N, C)  all tokens (keys/values)

    # ---- attention branch: pre-norm, batched multi-head SA, output projection ----
    yq = _layer_norm(xq, ln1_g[...], ln1_b[...]).astype(bf16)
    ykv = _layer_norm(xkv, ln1_g[...], ln1_b[...]).astype(bf16)

    # three lane-aligned (C, C) projections; attention scale is pre-folded into wq.
    q = jnp.dot(yq, wq[...], preferred_element_type=jnp.float32)
    k = jnp.dot(ykv, wk[...], preferred_element_type=jnp.float32)
    v = jnp.dot(ykv, wv[...], preferred_element_type=jnp.float32)

    # (n, C) -> (H, n, D); cast to bf16 BEFORE the layout shuffle (half the bytes).
    def heads(t, n):
        return pltpu.einshape("nhd->hnd", t.astype(bf16).reshape(n, H, D))

    qh, kh, vh = heads(q, TQ), heads(k, N), heads(v, N)

    # batched-head matmuls: one MXU call each instead of H tiny ones.
    s = jnp.einsum("hnd,hmd->hnm", qh, kh, preferred_element_type=jnp.float32)
    p = _softmax_lastdim(s)                                       # f32 (H, TQ, N)
    o = jnp.einsum("hnm,hmd->hnd", p.astype(bf16), vh,
                   preferred_element_type=jnp.float32)            # f32 (H, TQ, D)

    attn_out = pltpu.einshape("hnd->nhd", o.astype(bf16)).reshape(TQ, C)
    proj = jnp.dot(attn_out, w_proj[...],
                   preferred_element_type=jnp.float32) + b_proj[...]
    x = xq + proj                                 # residual 1 (DropPath = identity)

    # ---- MLP branch: pre-norm, fc1 -> GELU -> fc2, hidden dim chunked ----
    z = _layer_norm(x, ln2_g[...], ln2_b[...]).astype(bf16)
    n_chunks = hidden // hid_chunk

    def mlp_chunk(c, acc):
        start = pl.multiple_of(c * hid_chunk, hid_chunk)
        h = (jnp.dot(z, w1[:, pl.ds(start, hid_chunk)],
                     preferred_element_type=jnp.float32)
             + b1[:, pl.ds(start, hid_chunk)])
        h = _gelu_exact(h)                                        # f32 elementwise
        return acc + jnp.dot(h.astype(bf16), w2[pl.ds(start, hid_chunk), :],
                             preferred_element_type=jnp.float32)

    acc = lax.fori_loop(0, n_chunks, mlp_chunk,
                        jnp.zeros((TQ, C), jnp.float32), unroll=True)

    o_ref[0] = (x + acc + b2[...]).astype(o_ref.dtype)            # residual 2


# ----------------------------------- wrapper --------------------------------------

def prepare_params(params, num_heads):
    """One-time weight prep (qkv split, scale folding, bf16 cast) kept OUT of the
    per-call path so each forward doesn't re-stream the f32 weights."""
    bf16 = jnp.bfloat16
    C = params["w_proj"].shape[0]
    scale = (C // num_heads) ** (-0.5)
    w_qkv = params["w_qkv"]                       # (C, 3C), columns = [q | k | v]
    return {
        "ln1_g": params["ln1_g"], "ln1_b": params["ln1_b"],
        # scale folded into wq (free numerically: q is cast to bf16 right after)
        "wq": (w_qkv[:, 0 * C:1 * C] * scale).astype(bf16),
        "wk": w_qkv[:, 1 * C:2 * C].astype(bf16),
        "wv": w_qkv[:, 2 * C:3 * C].astype(bf16),
        "w_proj": params["w_proj"].astype(bf16), "b_proj": params["b_proj"],
        "ln2_g": params["ln2_g"], "ln2_b": params["ln2_b"],
        "w1": params["w1"].astype(bf16), "b1": params["b1"],
        "w2": params["w2"].astype(bf16), "b2": params["b2"],
    }


def _block_forward(x, pp, num_heads):
    B, N, C = x.shape
    head_dim = C // num_heads
    hidden = pp["w1"].shape[1]

    # token (q-row) tile: "parallel" grid axis -> bounded activations and megacore
    # sharding even when B is small.  (Real deployments pad N to a 128-multiple.)
    TQ = 128 if N % 128 == 0 else N
    # MLP hidden-dim chunk: bounds the f32 GELU activation to (TQ, TH).
    TH = 512 if hidden % 512 == 0 else hidden

    keys = ("ln1_g", "ln1_b", "wq", "wk", "wv", "w_proj", "b_proj",
            "ln2_g", "ln2_b", "w1", "b1", "w2", "b2")
    tensor_params = [pp[k] for k in keys]

    def weight_spec(p):
        # constant index map -> block never changes; single-buffer it so the
        # resident-weight VMEM footprint is 1x, not 2x (decisive on v7x 64 MiB).
        return pl.BlockSpec(p.shape, lambda b, qi, nd=p.ndim: (0,) * nd,
                            pipeline_mode=pl.Buffered(1))

    # advisory scheduling hint for XLA
    flops = (8 * B * N * C * C + 4 * B * N * N * C + 4 * B * N * C * hidden)
    transcendentals = B * (num_heads * N * N + 2 * N * hidden + 4 * N)
    bytes_accessed = (2 * B * N * C * 4
                      + 2 * (4 * C * C + 2 * C * hidden)
                      + 4 * (6 * C + 2 * hidden))

    grid_spec = pltpu.PrefetchScalarGridSpec(
        num_scalar_prefetch=0,
        grid=(B, N // TQ),
        in_specs=[pl.BlockSpec((1, TQ, C), lambda b, qi: (b, qi, 0)),   # q rows
                  pl.BlockSpec((1, N, C), lambda b, qi: (b, 0, 0))]     # all kv rows
                 + [weight_spec(p) for p in tensor_params],
        out_specs=pl.BlockSpec((1, TQ, C), lambda b, qi: (b, qi, 0)),
    )

    kernel = functools.partial(_block_kernel, num_heads, head_dim, TH)
    # NOTE: no input_output_aliases -- every q-tile step re-reads the full x block
    # for K/V, so aliasing the output buffer into x would be a correctness hazard.
    return pl.pallas_call(
        kernel,
        out_shape=jax.ShapeDtypeStruct((B, N, C), x.dtype),
        grid_spec=grid_spec,
        cost_estimate=pl.CostEstimate(flops=flops,
                                      transcendentals=transcendentals,
                                      bytes_accessed=bytes_accessed),
        compiler_params=pltpu.CompilerParams(
            dimension_semantics=("parallel", "parallel"),
            # default scoped VMEM is 16/32 MiB vs 128/64 MiB physical; raise so
            # real ViT sizes don't spill (64 MiB is safe on v5e/v6e/v7x alike).
            vmem_limit_bytes=64 << 20),
    )(x, x, *tensor_params)


block_forward = jax.jit(_block_forward, static_argnums=(2,))


# -------------------------------- pure-JAX reference -------------------------------

def block_reference(x, params, num_heads):
    B, N, C = x.shape
    head_dim = C // num_heads
    scale = head_dim ** (-0.5)

    def ln(v, g, b):
        mu = jnp.mean(v, -1, keepdims=True)
        var = jnp.mean(jnp.square(v - mu), -1, keepdims=True)
        return (v - mu) / jnp.sqrt(var + 1e-5) * g + b

    y = ln(x, params["ln1_g"], params["ln1_b"])
    qkv = y @ params["w_qkv"]
    qkv = qkv.reshape(B, N, 3, num_heads, head_dim).transpose(2, 0, 3, 1, 4)
    q, k, v = qkv[0], qkv[1], qkv[2]
    attn = jnp.einsum("bhnd,bhmd->bhnm", q, k) * scale
    attn = jax.nn.softmax(attn, -1)
    o = jnp.einsum("bhnm,bhmd->bhnd", attn, v).transpose(0, 2, 1, 3).reshape(B, N, C)
    o = o @ params["w_proj"] + params["b_proj"]
    x = x + o
    z = ln(x, params["ln2_g"], params["ln2_b"])
    h = z @ params["w1"] + params["b1"]
    h = 0.5 * h * (1.0 + jax.scipy.special.erf(h / jnp.sqrt(2.0)))
    h = h @ params["w2"] + params["b2"]
    return x + h


# ------------------------------------- main ----------------------------------------

if __name__ == "__main__":
    B, N, C = 2, 8, 32          # batch, tokens, dim
    num_heads = 4
    mlp_ratio = 4.0
    hidden = int(C * mlp_ratio)

    key = jax.random.PRNGKey(0)
    keys = jax.random.split(key, 8)

    params = {
        "ln1_g": jnp.ones((1, C), jnp.float32),
        "ln1_b": jnp.zeros((1, C), jnp.float32),
        "w_qkv": 0.02 * jax.random.normal(keys[0], (C, 3 * C), jnp.float32),  # qkv_bias=False
        "w_proj": 0.02 * jax.random.normal(keys[1], (C, C), jnp.float32),
        "b_proj": 0.01 * jax.random.normal(keys[2], (1, C), jnp.float32),
        "ln2_g": jnp.ones((1, C), jnp.float32),
        "ln2_b": jnp.zeros((1, C), jnp.float32),
        "w1": 0.02 * jax.random.normal(keys[3], (C, hidden), jnp.float32),
        "b1": 0.01 * jax.random.normal(keys[4], (1, hidden), jnp.float32),
        "w2": 0.02 * jax.random.normal(keys[5], (hidden, C), jnp.float32),
        "b2": 0.01 * jax.random.normal(keys[6], (1, C), jnp.float32),
    }
    x = jax.random.normal(keys[7], (B, N, C), jnp.float32)

    ref = block_reference(x, params, num_heads)          # pure-f32 reference

    pp = prepare_params(params, num_heads)               # one-time weight prep
    out = block_forward(x, pp, num_heads)
    out = jax.block_until_ready(out)

    assert out.shape == (B, N, C)
    max_err = float(jnp.max(jnp.abs(out - ref)))
    # bf16 matmul inputs (f32 accumulation) + approx EUP reciprocals -> loose tol
    assert max_err < 2e-3, f"max abs err {max_err}"

    print("KERNEL_OK")
</pallas_src>

<mosaic_0001>
module attributes {stable_mosaic.version = 11 : i64} {
  func.func @_block_kernel(%arg0: i32, %arg1: i32, %arg2: memref<1x8x32xf32, #tpu.memory_space<vmem>>, %arg3: memref<1x8x32xf32, #tpu.memory_space<vmem>>, %arg4: memref<1x32xf32, #tpu.memory_space<vmem>>, %arg5: memref<1x32xf32, #tpu.memory_space<vmem>>, %arg6: memref<32x32xbf16, #tpu.memory_space<vmem>>, %arg7: memref<32x32xbf16, #tpu.memory_space<vmem>>, %arg8: memref<32x32xbf16, #tpu.memory_space<vmem>>, %arg9: memref<32x32xbf16, #tpu.memory_space<vmem>>, %arg10: memref<1x32xf32, #tpu.memory_space<vmem>>, %arg11: memref<1x32xf32, #tpu.memory_space<vmem>>, %arg12: memref<1x32xf32, #tpu.memory_space<vmem>>, %arg13: memref<32x128xbf16, #tpu.memory_space<vmem>>, %arg14: memref<1x128xf32, #tpu.memory_space<vmem>>, %arg15: memref<128x32xbf16, #tpu.memory_space<vmem>>, %arg16: memref<1x32xf32, #tpu.memory_space<vmem>>, %arg17: memref<1x8x32xf32, #tpu.memory_space<vmem>>) attributes {dimension_semantics = [#tpu.dimension_semantics<parallel>, #tpu.dimension_semantics<parallel>], iteration_bounds = array<i64: 2, 1>, scalar_prefetch = 0 : i64, scratch_operands = 0 : i64, tpu.core_type = #tpu.core_type<tc>, window_params = [{transform_indices = @transform_0, window_bounds = array<i64: 1, 8, 32>}, {transform_indices = @transform_1, window_bounds = array<i64: 1, 8, 32>}, {pipeline_mode = #tpu.pipeline_mode<synchronous>, transform_indices = @transform_2, window_bounds = array<i64: 1, 32>}, {pipeline_mode = #tpu.pipeline_mode<synchronous>, transform_indices = @transform_3, window_bounds = array<i64: 1, 32>}, {pipeline_mode = #tpu.pipeline_mode<synchronous>, transform_indices = @transform_4, window_bounds = array<i64: 32, 32>}, {pipeline_mode = #tpu.pipeline_mode<synchronous>, transform_indices = @transform_5, window_bounds = array<i64: 32, 32>}, {pipeline_mode = #tpu.pipeline_mode<synchronous>, transform_indices = @transform_6, window_bounds = array<i64: 32, 32>}, {pipeline_mode = #tpu.pipeline_mode<synchronous>, transform_indices = @transform_7, window_bounds = array<i64: 32, 32>}, {pipeline_mode = #tpu.pipeline_mode<synchronous>, transform_indices = @transform_8, window_bounds = array<i64: 1, 32>}, {pipeline_mode = #tpu.pipeline_mode<synchronous>, transform_indices = @transform_9, window_bounds = array<i64: 1, 32>}, {pipeline_mode = #tpu.pipeline_mode<synchronous>, transform_indices = @transform_10, window_bounds = array<i64: 1, 32>}, {pipeline_mode = #tpu.pipeline_mode<synchronous>, transform_indices = @transform_11, window_bounds = array<i64: 32, 128>}, {pipeline_mode = #tpu.pipeline_mode<synchronous>, transform_indices = @transform_12, window_bounds = array<i64: 1, 128>}, {pipeline_mode = #tpu.pipeline_mode<synchronous>, transform_indices = @transform_13, window_bounds = array<i64: 128, 32>}, {pipeline_mode = #tpu.pipeline_mode<synchronous>, transform_indices = @transform_14, window_bounds = array<i64: 1, 32>}, {transform_indices = @transform_15, window_bounds = array<i64: 1, 8, 32>}]} {
    %c0 = arith.constant 0 : index
    %c0_0 = arith.constant 0 : index
    %c0_1 = arith.constant 0 : index
    %0 = vector.load %arg2[%c0, %c0_0, %c0_1] : memref<1x8x32xf32, #tpu.memory_space<vmem>>, vector<1x8x32xf32>
    %1 = vector.shape_cast %0 : vector<1x8x32xf32> to vector<8x32xf32>
    %c0_2 = arith.constant 0 : index
    %c0_3 = arith.constant 0 : index
    %c0_4 = arith.constant 0 : index
    %2 = vector.load %arg3[%c0_2, %c0_3, %c0_4] : memref<1x8x32xf32, #tpu.memory_space<vmem>>, vector<1x8x32xf32>
    %3 = vector.shape_cast %2 : vector<1x8x32xf32> to vector<8x32xf32>
    %c0_5 = arith.constant 0 : index
    %c0_6 = arith.constant 0 : index
    %4 = vector.load %arg4[%c0_5, %c0_6] : memref<1x32xf32, #tpu.memory_space<vmem>>, vector<1x32xf32>
    %c0_7 = arith.constant 0 : index
    %c0_8 = arith.constant 0 : index
    %5 = vector.load %arg5[%c0_7, %c0_8] : memref<1x32xf32, #tpu.memory_space<vmem>>, vector<1x32xf32>
    %cst = arith.constant dense<0.000000e+00> : vector<8xf32>
    %6 = vector.multi_reduction <add>, %1, %cst [1] : vector<8x32xf32> to vector<8xf32>
    %7 = vector.shape_cast %6 : vector<8xf32> to vector<8x1xf32>
    %cst_9 = arith.constant 3.200000e+01 : f32
    %8 = vector.broadcast %cst_9 : f32 to vector<8x1xf32>
    %9 = arith.divf %7, %8 : vector<8x1xf32>
    %10 = vector.broadcast %9 : vector<8x1xf32> to vector<8x32xf32>
    %11 = arith.subf %1, %10 : vector<8x32xf32>
    %12 = arith.mulf %11, %11 : vector<8x32xf32>
    %cst_10 = arith.constant dense<0.000000e+00> : vector<8xf32>
    %13 = vector.multi_reduction <add>, %12, %cst_10 [1] : vector<8x32xf32> to vector<8xf32>
    %14 = vector.shape_cast %13 : vector<8xf32> to vector<8x1xf32>
    %cst_11 = arith.constant 3.200000e+01 : f32
    %15 = vector.broadcast %cst_11 : f32 to vector<8x1xf32>
    %16 = arith.divf %14, %15 : vector<8x1xf32>
    %17 = vector.broadcast %9 : vector<8x1xf32> to vector<8x32xf32>
    %18 = arith.subf %1, %17 : vector<8x32xf32>
    %cst_12 = arith.constant 9.99999974E-6 : f32
    %19 = vector.broadcast %cst_12 : f32 to vector<8x1xf32>
    %20 = arith.addf %16, %19 : vector<8x1xf32>
    %21 = math.rsqrt %20 : vector<8x1xf32>
    %22 = vector.broadcast %21 : vector<8x1xf32> to vector<8x32xf32>
    %23 = arith.mulf %18, %22 : vector<8x32xf32>
    %24 = vector.broadcast %4 : vector<1x32xf32> to vector<8x32xf32>
    %25 = arith.mulf %23, %24 : vector<8x32xf32>
    %26 = vector.broadcast %5 : vector<1x32xf32> to vector<8x32xf32>
    %27 = arith.addf %25, %26 : vector<8x32xf32>
    %28 = arith.truncf %27 : vector<8x32xf32> to vector<8x32xbf16>
    %c0_13 = arith.constant 0 : index
    %c0_14 = arith.constant 0 : index
    %29 = vector.load %arg4[%c0_13, %c0_14] : memref<1x32xf32, #tpu.memory_space<vmem>>, vector<1x32xf32>
    %c0_15 = arith.constant 0 : index
    %c0_16 = arith.constant 0 : index
    %30 = vector.load %arg5[%c0_15, %c0_16] : memref<1x32xf32, #tpu.memory_space<vmem>>, vector<1x32xf32>
    %cst_17 = arith.constant dense<0.000000e+00> : vector<8xf32>
    %31 = vector.multi_reduction <add>, %3, %cst_17 [1] : vector<8x32xf32> to vector<8xf32>
    %32 = vector.shape_cast %31 : vector<8xf32> to vector<8x1xf32>
    %cst_18 = arith.constant 3.200000e+01 : f32
    %33 = vector.broadcast %cst_18 : f32 to vector<8x1xf32>
    %34 = arith.divf %32, %33 : vector<8x1xf32>
    %35 = vector.broadcast %34 : vector<8x1xf32> to vector<8x32xf32>
    %36 = arith.subf %3, %35 : vector<8x32xf32>
    %37 = arith.mulf %36, %36 : vector<8x32xf32>
    %cst_19 = arith.constant dense<0.000000e+00> : vector<8xf32>
    %38 = vector.multi_reduction <add>, %37, %cst_19 [1] : vector<8x32xf32> to vector<8xf32>
    %39 = vector.shape_cast %38 : vector<8xf32> to vector<8x1xf32>
    %cst_20 = arith.constant 3.200000e+01 : f32
    %40 = vector.broadcast %cst_20 : f32 to vector<8x1xf32>
    %41 = arith.divf %39, %40 : vector<8x1xf32>
    %42 = vector.broadcast %34 : vector<8x1xf32> to vector<8x32xf32>
    %43 = arith.subf %3, %42 : vector<8x32xf32>
    %cst_21 = arith.constant 9.99999974E-6 : f32
    %44 = vector.broadcast %cst_21 : f32 to vector<8x1xf32>
    %45 = arith.addf %41, %44 : vector<8x1xf32>
    %46 = math.rsqrt %45 : vector<8x1xf32>
    %47 = vector.broadcast %46 : vector<8x1xf32> to vector<8x32xf32>
    %48 = arith.mulf %43, %47 : vector<8x32xf32>
    %49 = vector.broadcast %29 : vector<1x32xf32> to vector<8x32xf32>
    %50 = arith.mulf %48, %49 : vector<8x32xf32>
    %51 = vector.broadcast %30 : vector<1x32xf32> to vector<8x32xf32>
    %52 = arith.addf %50, %51 : vector<8x32xf32>
    %53 = arith.truncf %52 : vector<8x32xf32> to vector<8x32xbf16>
    %c0_22 = arith.constant 0 : index
    %c0_23 = arith.constant 0 : index
    %54 = vector.load %arg6[%c0_22, %c0_23] : memref<32x32xbf16, #tpu.memory_space<vmem>>, vector<32x32xbf16>
    %cst_24 = arith.constant dense<0.000000e+00> : vector<8x32xf32>
    %55 = tpu.matmul %28, %54, %cst_24 {dimension_numbers = #tpu.dot_dimension_numbers<[1], [0], [0], [1], [0, 0, 1, 1], [], []>} : vector<8x32xbf16>, vector<32x32xbf16>, vector<8x32xf32> -> vector<8x32xf32>
    %c0_25 = arith.constant 0 : index
    %c0_26 = arith.constant 0 : index
    %56 = vector.load %arg7[%c0_25, %c0_26] : memref<32x32xbf16, #tpu.memory_space<vmem>>, vector<32x32xbf16>
    %cst_27 = arith.constant dense<0.000000e+00> : vector<8x32xf32>
    %57 = tpu.matmul %53, %56, %cst_27 {dimension_numbers = #tpu.dot_dimension_numbers<[1], [0], [0], [1], [0, 0, 1, 1], [], []>} : vector<8x32xbf16>, vector<32x32xbf16>, vector<8x32xf32> -> vector<8x32xf32>
    %c0_28 = arith.constant 0 : index
    %c0_29 = arith.constant 0 : index
    %58 = vector.load %arg8[%c0_28, %c0_29] : memref<32x32xbf16, #tpu.memory_space<vmem>>, vector<32x32xbf16>
    %cst_30 = arith.constant dense<0.000000e+00> : vector<8x32xf32>
    %59 = tpu.matmul %53, %58, %cst_30 {dimension_numbers = #tpu.dot_dimension_numbers<[1], [0], [0], [1], [0, 0, 1, 1], [], []>} : vector<8x32xbf16>, vector<32x32xbf16>, vector<8x32xf32> -> vector<8x32xf32>
    %60 = arith.truncf %55 : vector<8x32xf32> to vector<8x32xbf16>
    %61 = vector.shape_cast %60 : vector<8x32xbf16> to vector<8x4x8xbf16>
    %62 = tpu.transpose %61, [1, 0, 2] : vector<8x4x8xbf16> -> vector<4x8x8xbf16>
    %63 = arith.truncf %57 : vector<8x32xf32> to vector<8x32xbf16>
    %64 = vector.shape_cast %63 : vector<8x32xbf16> to vector<8x4x8xbf16>
    %65 = tpu.transpose %64, [1, 0, 2] : vector<8x4x8xbf16> -> vector<4x8x8xbf16>
    %66 = arith.truncf %59 : vector<8x32xf32> to vector<8x32xbf16>
    %67 = vector.shape_cast %66 : vector<8x32xbf16> to vector<8x4x8xbf16>
    %68 = tpu.transpose %67, [1, 0, 2] : vector<8x4x8xbf16> -> vector<4x8x8xbf16>
    "tpu.trace_start"() <{level = 10 : i32, message = "hnd,hmd->hnm"}> : () -> ()
    %cst_31 = arith.constant dense<0.000000e+00> : vector<4x8x8xf32>
    %69 = tpu.matmul %62, %65, %cst_31 {dimension_numbers = #tpu.dot_dimension_numbers<[2], [2], [1], [1], [0, 0, 0, 1, 1, 1], [0], [0]>} : vector<4x8x8xbf16>, vector<4x8x8xbf16>, vector<4x8x8xf32> -> vector<4x8x8xf32>
    "tpu.trace_stop"() : () -> ()
    %cst_32 = arith.constant dense<0xFF800000> : vector<4x8xf32>
    %70 = vector.multi_reduction <maximumf>, %69, %cst_32 [2] : vector<4x8x8xf32> to vector<4x8xf32>
    %71 = vector.shape_cast %70 : vector<4x8xf32> to vector<4x8x1xf32>
    %72 = vector.broadcast %71 : vector<4x8x1xf32> to vector<4x8x8xf32>
    %73 = arith.subf %69, %72 : vector<4x8x8xf32>
    %74 = math.exp %73 : vector<4x8x8xf32>
    %cst_33 = arith.constant dense<0.000000e+00> : vector<4x8xf32>
    %75 = vector.multi_reduction <add>, %74, %cst_33 [2] : vector<4x8x8xf32> to vector<4x8xf32>
    %76 = vector.shape_cast %75 : vector<4x8xf32> to vector<4x8x1xf32>
    %77 = tpu.reciprocal %76 {approx = true} : vector<4x8x1xf32> -> vector<4x8x1xf32>
    %78 = vector.broadcast %77 : vector<4x8x1xf32> to vector<4x8x8xf32>
    %79 = arith.mulf %74, %78 : vector<4x8x8xf32>
    %80 = arith.truncf %79 : vector<4x8x8xf32> to vector<4x8x8xbf16>
    "tpu.trace_start"() <{level = 10 : i32, message = "hnm,hmd->hnd"}> : () -> ()
    %cst_34 = arith.constant dense<0.000000e+00> : vector<4x8x8xf32>
    %81 = tpu.matmul %80, %68, %cst_34 {dimension_numbers = #tpu.dot_dimension_numbers<[2], [1], [1], [2], [0, 0, 0, 1, 1, 2], [0], [0]>} : vector<4x8x8xbf16>, vector<4x8x8xbf16>, vector<4x8x8xf32> -> vector<4x8x8xf32>
    "tpu.trace_stop"() : () -> ()
    %82 = arith.truncf %81 : vector<4x8x8xf32> to vector<4x8x8xbf16>
    %83 = tpu.transpose %82, [1, 0, 2] : vector<4x8x8xbf16> -> vector<8x4x8xbf16>
    %84 = vector.shape_cast %83 : vector<8x4x8xbf16> to vector<8x32xbf16>
    %c0_35 = arith.constant 0 : index
    %c0_36 = arith.constant 0 : index
    %85 = vector.load %arg9[%c0_35, %c0_36] : memref<32x32xbf16, #tpu.memory_space<vmem>>, vector<32x32xbf16>
    %cst_37 = arith.constant dense<0.000000e+00> : vector<8x32xf32>
    %86 = tpu.matmul %84, %85, %cst_37 {dimension_numbers = #tpu.dot_dimension_numbers<[1], [0], [0], [1], [0, 0, 1, 1], [], []>} : vector<8x32xbf16>, vector<32x32xbf16>, vector<8x32xf32> -> vector<8x32xf32>
    %c0_38 = arith.constant 0 : index
    %c0_39 = arith.constant 0 : index
    %87 = vector.load %arg10[%c0_38, %c0_39] : memref<1x32xf32, #tpu.memory_space<vmem>>, vector<1x32xf32>
    %88 = vector.broadcast %87 : vector<1x32xf32> to vector<8x32xf32>
    %89 = arith.addf %86, %88 : vector<8x32xf32>
    %90 = arith.addf %1, %89 : vector<8x32xf32>
    %c0_40 = arith.constant 0 : index
    %c0_41 = arith.constant 0 : index
    %91 = vector.load %arg11[%c0_40, %c0_41] : memref<1x32xf32, #tpu.memory_space<vmem>>, vector<1x32xf32>
    %c0_42 = arith.constant 0 : index
    %c0_43 = arith.constant 0 : index
    %92 = vector.load %arg12[%c0_42, %c0_43] : memref<1x32xf32, #tpu.memory_space<vmem>>, vector<1x32xf32>
    %cst_44 = arith.constant dense<0.000000e+00> : vector<8xf32>
    %93 = vector.multi_reduction <add>, %90, %cst_44 [1] : vector<8x32xf32> to vector<8xf32>
    %94 = vector.shape_cast %93 : vector<8xf32> to vector<8x1xf32>
    %cst_45 = arith.constant 3.200000e+01 : f32
    %95 = vector.broadcast %cst_45 : f32 to vector<8x1xf32>
    %96 = arith.divf %94, %95 : vector<8x1xf32>
    %97 = vector.broadcast %96 : vector<8x1xf32> to vector<8x32xf32>
    %98 = arith.subf %90, %97 : vector<8x32xf32>
    %99 = arith.mulf %98, %98 : vector<8x32xf32>
    %cst_46 = arith.constant dense<0.000000e+00> : vector<8xf32>
    %100 = vector.multi_reduction <add>, %99, %cst_46 [1] : vector<8x32xf32> to vector<8xf32>
    %101 = vector.shape_cast %100 : vector<8xf32> to vector<8x1xf32>
    %cst_47 = arith.constant 3.200000e+01 : f32
    %102 = vector.broadcast %cst_47 : f32 to vector<8x1xf32>
    %103 = arith.divf %101, %102 : vector<8x1xf32>
    %104 = vector.broadcast %96 : vector<8x1xf32> to vector<8x32xf32>
    %105 = arith.subf %90, %104 : vector<8x32xf32>
    %cst_48 = arith.constant 9.99999974E-6 : f32
    %106 = vector.broadcast %cst_48 : f32 to vector<8x1xf32>
    %107 = arith.addf %103, %106 : vector<8x1xf32>
    %108 = math.rsqrt %107 : vector<8x1xf32>
    %109 = vector.broadcast %108 : vector<8x1xf32> to vector<8x32xf32>
    %110 = arith.mulf %105, %109 : vector<8x32xf32>
    %111 = vector.broadcast %91 : vector<1x32xf32> to vector<8x32xf32>
    %112 = arith.mulf %110, %111 : vector<8x32xf32>
    %113 = vector.broadcast %92 : vector<1x32xf32> to vector<8x32xf32>
    %114 = arith.addf %112, %113 : vector<8x32xf32>
    %115 = arith.truncf %114 : vector<8x32xf32> to vector<8x32xbf16>
    %cst_49 = arith.constant 0.000000e+00 : f32
    %116 = vector.broadcast %cst_49 : f32 to vector<8x32xf32>
    %c0_i32 = arith.constant 0 : i32
    %c128_i32 = arith.constant 128 : i32
    %117 = arith.muli %c0_i32, %c128_i32 : i32
    %118 = tpu.assume_multiple %117, 128 : i32
    %c0_50 = arith.constant 0 : index
    %119 = arith.index_cast %118 : i32 to index
    %120 = vector.load %arg13[%c0_50, %119] : memref<32x128xbf16, #tpu.memory_space<vmem>>, vector<32x128xbf16>
    %cst_51 = arith.constant dense<0.000000e+00> : vector<8x128xf32>
    %121 = tpu.matmul %115, %120, %cst_51 {dimension_numbers = #tpu.dot_dimension_numbers<[1], [0], [0], [1], [0, 0, 1, 1], [], []>} : vector<8x32xbf16>, vector<32x128xbf16>, vector<8x128xf32> -> vector<8x128xf32>
    %c0_52 = arith.constant 0 : index
    %122 = arith.index_cast %118 : i32 to index
    %123 = vector.load %arg14[%c0_52, %122] : memref<1x128xf32, #tpu.memory_space<vmem>>, vector<1x128xf32>
    %124 = vector.broadcast %123 : vector<1x128xf32> to vector<8x128xf32>
    %125 = arith.addf %121, %124 : vector<8x128xf32>
    %cst_53 = arith.constant 5.000000e-01 : f32
    %126 = vector.broadcast %cst_53 : f32 to vector<8x128xf32>
    %127 = arith.mulf %126, %125 : vector<8x128xf32>
    %cst_54 = arith.constant 0.707106769 : f32
    %128 = vector.broadcast %cst_54 : f32 to vector<8x128xf32>
    %129 = arith.mulf %125, %128 : vector<8x128xf32>
    %130 = math.absf %129 : vector<8x128xf32>
    %cst_55 = arith.constant 0.327591091 : f32
    %131 = vector.broadcast %cst_55 : f32 to vector<8x128xf32>
    %132 = arith.mulf %131, %130 : vector<8x128xf32>
    %cst_56 = arith.constant 1.000000e+00 : f32
    %133 = vector.broadcast %cst_56 : f32 to vector<8x128xf32>
    %134 = arith.addf %133, %132 : vector<8x128xf32>
    %135 = tpu.reciprocal %134 {approx = true} : vector<8x128xf32> -> vector<8x128xf32>
    %cst_57 = arith.constant 1.06140542 : f32
    %136 = vector.broadcast %cst_57 : f32 to vector<8x128xf32>
    %137 = arith.mulf %136, %135 : vector<8x128xf32>
    %cst_58 = arith.constant -1.45315206 : f32
    %138 = vector.broadcast %cst_58 : f32 to vector<8x128xf32>
    %139 = arith.addf %137, %138 : vector<8x128xf32>
    %140 = arith.mulf %139, %135 : vector<8x128xf32>
    %cst_59 = arith.constant 1.42141378 : f32
    %141 = vector.broadcast %cst_59 : f32 to vector<8x128xf32>
    %142 = arith.addf %140, %141 : vector<8x128xf32>
    %143 = arith.mulf %142, %135 : vector<8x128xf32>
    %cst_60 = arith.constant -0.284496725 : f32
    %144 = vector.broadcast %cst_60 : f32 to vector<8x128xf32>
    %145 = arith.addf %143, %144 : vector<8x128xf32>
    %146 = arith.mulf %145, %135 : vector<8x128xf32>
    %cst_61 = arith.constant 0.254829586 : f32
    %147 = vector.broadcast %cst_61 : f32 to vector<8x128xf32>
    %148 = arith.addf %146, %147 : vector<8x128xf32>
    %149 = arith.mulf %148, %135 : vector<8x128xf32>
    %cst_62 = arith.constant 0.000000e+00 : f32
    %150 = vector.broadcast %cst_62 : f32 to vector<8x128xf32>
    %151 = arith.subf %150, %130 : vector<8x128xf32>
    %152 = arith.mulf %151, %130 : vector<8x128xf32>
    %153 = math.exp %152 : vector<8x128xf32>
    %154 = arith.mulf %149, %153 : vector<8x128xf32>
    %cst_63 = arith.constant 1.000000e+00 : f32
    %155 = vector.broadcast %cst_63 : f32 to vector<8x128xf32>
    %156 = arith.subf %155, %154 : vector<8x128xf32>
    %cst_64 = arith.constant 0.000000e+00 : f32
    %157 = vector.broadcast %cst_64 : f32 to vector<8x128xf32>
    %158 = arith.cmpf olt, %129, %157 : vector<8x128xf32>
    %cst_65 = arith.constant 0.000000e+00 : f32
    %159 = vector.broadcast %cst_65 : f32 to vector<8x128xf32>
    %160 = arith.subf %159, %156 : vector<8x128xf32>
    %161 = arith.select %158, %160, %156 : vector<8x128xi1>, vector<8x128xf32>
    %cst_66 = arith.constant 1.000000e+00 : f32
    %162 = vector.broadcast %cst_66 : f32 to vector<8x128xf32>
    %163 = arith.addf %162, %161 : vector<8x128xf32>
    %164 = arith.mulf %127, %163 : vector<8x128xf32>
    %165 = arith.truncf %164 : vector<8x128xf32> to vector<8x128xbf16>
    %166 = arith.index_cast %118 : i32 to index
    %c0_67 = arith.constant 0 : index
    %167 = vector.load %arg15[%166, %c0_67] : memref<128x32xbf16, #tpu.memory_space<vmem>>, vector<128x32xbf16>
    %cst_68 = arith.constant dense<0.000000e+00> : vector<8x32xf32>
    %168 = tpu.matmul %165, %167, %cst_68 {dimension_numbers = #tpu.dot_dimension_numbers<[1], [0], [0], [1], [0, 0, 1, 1], [], []>} : vector<8x128xbf16>, vector<128x32xbf16>, vector<8x32xf32> -> vector<8x32xf32>
    %169 = arith.addf %116, %168 : vector<8x32xf32>
    %c1_i32 = arith.constant 1 : i32
    %170 = arith.addf %90, %169 : vector<8x32xf32>
    %c0_69 = arith.constant 0 : index
    %c0_70 = arith.constant 0 : index
    %171 = vector.load %arg16[%c0_69, %c0_70] : memref<1x32xf32, #tpu.memory_space<vmem>>, vector<1x32xf32>
    %172 = vector.broadcast %171 : vector<1x32xf32> to vector<8x32xf32>
    %173 = arith.addf %170, %172 : vector<8x32xf32>
    %c0_71 = arith.constant 0 : index
    %c0_72 = arith.constant 0 : index
    %c0_73 = arith.constant 0 : index
    %174 = vector.load %arg17[%c0_71, %c0_72, %c0_73] : memref<1x8x32xf32, #tpu.memory_space<vmem>>, vector<1x8x32xf32>
    %175 = vector.shape_cast %174 : vector<1x8x32xf32> to vector<8x32xf32>
    %176 = vector.shape_cast %173 : vector<8x32xf32> to vector<1x8x32xf32>
    tpu.vector_store %arg17[%c0_71, %c0_72, %c0_73], %176 {strides = array<i32>} : memref<1x8x32xf32, #tpu.memory_space<vmem>>, vector<1x8x32xf32>,
    return
  }
  func.func @transform_0(%arg0: i32, %arg1: i32) -> (i32, i32, i32) {
    %c0_i32 = arith.constant 0 : i32
    %c0_i32_0 = arith.constant 0 : i32
    return %arg0, %arg1, %c0_i32 : i32, i32, i32
  }
  func.func @transform_1(%arg0: i32, %arg1: i32) -> (i32, i32, i32) {
    %c0_i32 = arith.constant 0 : i32
    %c0_i32_0 = arith.constant 0 : i32
    %c0_i32_1 = arith.constant 0 : i32
    return %arg0, %c0_i32, %c0_i32_0 : i32, i32, i32
  }
  func.func @transform_2(%arg0: i32, %arg1: i32) -> (i32, i32) {
    %c0_i32 = arith.constant 0 : i32
    %c0_i32_0 = arith.constant 0 : i32
    %c0_i32_1 = arith.constant 0 : i32
    return %c0_i32, %c0_i32_0 : i32, i32
  }
  func.func @transform_3(%arg0: i32, %arg1: i32) -> (i32, i32) {
    %c0_i32 = arith.constant 0 : i32
    %c0_i32_0 = arith.constant 0 : i32
    %c0_i32_1 = arith.constant 0 : i32
    return %c0_i32, %c0_i32_0 : i32, i32
  }
  func.func @transform_4(%arg0: i32, %arg1: i32) -> (i32, i32) {
    %c0_i32 = arith.constant 0 : i32
    %c0_i32_0 = arith.constant 0 : i32
    %c0_i32_1 = arith.constant 0 : i32
    return %c0_i32, %c0_i32_0 : i32, i32
  }
  func.func @transform_5(%arg0: i32, %arg1: i32) -> (i32, i32) {
    %c0_i32 = arith.constant 0 : i32
    %c0_i32_0 = arith.constant 0 : i32
    %c0_i32_1 = arith.constant 0 : i32
    return %c0_i32, %c0_i32_0 : i32, i32
  }
  func.func @transform_6(%arg0: i32, %arg1: i32) -> (i32, i32) {
    %c0_i32 = arith.constant 0 : i32
    %c0_i32_0 = arith.constant 0 : i32
    %c0_i32_1 = arith.constant 0 : i32
    return %c0_i32, %c0_i32_0 : i32, i32
  }
  func.func @transform_7(%arg0: i32, %arg1: i32) -> (i32, i32) {
    %c0_i32 = arith.constant 0 : i32
    %c0_i32_0 = arith.constant 0 : i32
    %c0_i32_1 = arith.constant 0 : i32
    return %c0_i32, %c0_i32_0 : i32, i32
  }
  func.func @transform_8(%arg0: i32, %arg1: i32) -> (i32, i32) {
    %c0_i32 = arith.constant 0 : i32
    %c0_i32_0 = arith.constant 0 : i32
    %c0_i32_1 = arith.constant 0 : i32
    return %c0_i32, %c0_i32_0 : i32, i32
  }
  func.func @transform_9(%arg0: i32, %arg1: i32) -> (i32, i32) {
    %c0_i32 = arith.constant 0 : i32
    %c0_i32_0 = arith.constant 0 : i32
    %c0_i32_1 = arith.constant 0 : i32
    return %c0_i32, %c0_i32_0 : i32, i32
  }
  func.func @transform_10(%arg0: i32, %arg1: i32) -> (i32, i32) {
    %c0_i32 = arith.constant 0 : i32
    %c0_i32_0 = arith.constant 0 : i32
    %c0_i32_1 = arith.constant 0 : i32
    return %c0_i32, %c0_i32_0 : i32, i32
  }
  func.func @transform_11(%arg0: i32, %arg1: i32) -> (i32, i32) {
    %c0_i32 = arith.constant 0 : i32
    %c0_i32_0 = arith.constant 0 : i32
    %c0_i32_1 = arith.constant 0 : i32
    return %c0_i32, %c0_i32_0 : i32, i32
  }
  func.func @transform_12(%arg0: i32, %arg1: i32) -> (i32, i32) {
    %c0_i32 = arith.constant 0 : i32
    %c0_i32_0 = arith.constant 0 : i32
    %c0_i32_1 = arith.constant 0 : i32
    return %c0_i32, %c0_i32_0 : i32, i32
  }
  func.func @transform_13(%arg0: i32, %arg1: i32) -> (i32, i32) {
    %c0_i32 = arith.constant 0 : i32
    %c0_i32_0 = arith.constant 0 : i32
    %c0_i32_1 = arith.constant 0 : i32
    return %c0_i32, %c0_i32_0 : i32, i32
  }
  func.func @transform_14(%arg0: i32, %arg1: i32) -> (i32, i32) {
    %c0_i32 = arith.constant 0 : i32
    %c0_i32_0 = arith.constant 0 : i32
    %c0_i32_1 = arith.constant 0 : i32
    return %c0_i32, %c0_i32_0 : i32, i32
  }
  func.func @transform_15(%arg0: i32, %arg1: i32) -> (i32, i32, i32) {
    %c0_i32 = arith.constant 0 : i32
    %c0_i32_0 = arith.constant 0 : i32
    return %arg0, %arg1, %c0_i32 : i32, i32, i32
  }
}

</mosaic_0001>

<llo_original>
// kernel: _block_forward.1
$region0: #{_block_forward.1}
  #allocation0 [shape = 'u32[]', space=smem, size = 0x4, offset = 0x4, fixed_abs, tag = 'smem constant byte address 0x4 - core index']
  #allocation1 [shape = 'u32[144,128]{1,0:T(1,128)}', space=vmem, size = 0x12000, scoped, tag = 'internal scratch']
  %s0 = inlined_call_operand.vmem [shape: f32[2,8,32], index: 0, kind: input, shape index: {}, may-alias: {0,1}]
  %s1 = inlined_call_operand.vmem [shape: f32[2,8,32], index: 1, kind: input, shape index: {}, may-alias: {0,1}]
  %s2 = inlined_call_operand.hbm [shape: f32[1,32], index: 2, kind: input, shape index: {}]
  %s3 = inlined_call_operand.hbm [shape: f32[1,32], index: 3, kind: input, shape index: {}]
  %s4 = inlined_call_operand.vmem [shape: bf16[32,32], index: 4, kind: input, shape index: {}]
  %s5 = inlined_call_operand.vmem [shape: bf16[32,32], index: 5, kind: input, shape index: {}]
  %s6 = inlined_call_operand.vmem [shape: bf16[32,32], index: 6, kind: input, shape index: {}]
  %s7 = inlined_call_operand.vmem [shape: bf16[32,32], index: 7, kind: input, shape index: {}]
  %s8 = inlined_call_operand.hbm [shape: f32[1,32], index: 8, kind: input, shape index: {}]
  %s9 = inlined_call_operand.hbm [shape: f32[1,32], index: 9, kind: input, shape index: {}]
  %s10 = inlined_call_operand.hbm [shape: f32[1,32], index: 10, kind: input, shape index: {}]
  %s11 = inlined_call_operand.hbm [shape: bf16[32,128], index: 11, kind: input, shape index: {}]
  %s12 = inlined_call_operand.hbm [shape: f32[1,128], index: 12, kind: input, shape index: {}]
  %s13 = inlined_call_operand.vmem [shape: bf16[128,32], index: 13, kind: input, shape index: {}]
  %s14 = inlined_call_operand.hbm [shape: f32[1,32], index: 14, kind: input, shape index: {}]
  %s15 = inlined_call_operand.hbm [shape: f32[2,8,32], index: 15, kind: output, shape index: {}]
  %s16 = sld [smem:[#allocation0]]
  $region125: #{_block_forward.1} parent=0
    _
  %s18 = ssub.s32 1, %s16
  %s19 = scalar_select 0, %s18, %s16
  $region1: #{_block_forward.1} parent=0
    #allocation2 [shape = 'u8[512]{0}', space=vmem, size = 0x400, scoped, tag = 'input window, operand 2, single buffered']
    #allocation3 [shape = 's32[2]{0}', space=sflag, size = 0x8, scoped, tag = 'scoped memory for _block_forward.1']
    #allocation4 [shape = 's32[2]{0}', space=sflag, size = 0x8, scoped, tag = 'scoped memory for _block_forward.1']
    #allocation5 [shape = 'u8[512]{0}', space=vmem, size = 0x400, scoped, tag = 'input window, operand 3, single buffered']
    #allocation6 [shape = 's32[1]{0}', space=sflag, size = 0x4, scoped, tag = 'scoped memory for _block_forward.1']
    #allocation7 [shape = 'u8[512]{0}', space=vmem, size = 0x400, scoped, tag = 'input window, operand 8, single buffered']
    #allocation8 [shape = 'u8[512]{0}', space=vmem, size = 0x400, scoped, tag = 'input window, operand 9, single buffered']
    #allocation9 [shape = 's32[1]{0}', space=sflag, size = 0x4, scoped, tag = 'scoped memory for _block_forward.1']
    #allocation10 [shape = 'u8[512]{0}', space=vmem, size = 0x400, scoped, tag = 'input window, operand 10, single buffered']
    #allocation11 [shape = 'u8[8192]{0}', space=vmem, size = 0x2000, scoped, tag = 'input window, operand 11, single buffered']
    #allocation12 [shape = 's32[1]{0}', space=sflag, size = 0x4, scoped, tag = 'scoped memory for _block_forward.1']
    #allocation13 [shape = 'u8[512]{0}', space=vmem, size = 0x400, scoped, tag = 'input window, operand 12, single buffered']
    #allocation14 [shape = 'u8[512]{0}', space=vmem, size = 0x400, scoped, tag = 'input window, operand 14, single buffered']
    #allocation15 [shape = 's32[1]{0}', space=sflag, size = 0x4, scoped, tag = 'scoped memory for _block_forward.1']
    #allocation16 [shape = 'u8[8192]{0}', space=vmem, size = 0x2000, scoped, tag = 'output window, operand 0']
    %20 = vsyncpa [#allocation3], 0
    %21 = vsyncpa [#allocation6], 0
    %22 = vsyncpa [#allocation9], 0
    %23 = vsyncpa [#allocation12], 0
    %24 = vsyncpa [#allocation15], 0
    %25 = vsyncpa [#allocation4], 0
    %s26 = scalar_lea.sflag [#allocation4], 1
    %27 = vsyncpa %s26, 0
    loop: start=0, step=1, limit=4
    $region2: #{_block_forward.1} parent=1 // loop_pre_header
      _
    $region3: #{_block_forward.1} parent=1 // loop_header
      %s29 = sphi 0, %s33
      %p30 = scmp.ge.s32.totalorder %s29, 4
      %s36 = sphi 0, %s48
      %s37 = sphi 0, %s44
      %s38 = sphi 0, %s36
      %s39 = sphi 0, %s37
      %s40 = sphi 0, %s38
      %s41 = sphi 0, %s39
      %s53 = sphi 0, %s55
      %s56 = sphi 0, %s53
      %s57 = sphi 0, %s56
      %s73 = sphi 0, %s57
      %s79 = sphi 0, %s81
      %s82 = sphi 0, %s79
      %s83 = sphi 0, %s82
      %s99 = sphi 0, %s83
      %s103 = sphi 0, %s103
      %s105 = sphi 0, %s103
      %s106 = sphi 0, %s105
      %s120 = sphi 0, %s106
      %s124 = sphi 0, %s124
      %s126 = sphi 0, %s124
      %s127 = sphi 0, %s126
      %s141 = sphi 0, %s127
      %s145 = sphi 0, %s145
      %s147 = sphi 0, %s145
      %s148 = sphi 0, %s147
      %s162 = sphi 0, %s148
      %s166 = sphi 0, %s166
      %s168 = sphi 0, %s166
      %s169 = sphi 0, %s168
      %s183 = sphi 0, %s169
      %s187 = sphi 0, %s187
      %s189 = sphi 0, %s187
      %s190 = sphi 0, %s189
      %s204 = sphi 0, %s190
      %s208 = sphi 0, %s208
      %s210 = sphi 0, %s208
      %s211 = sphi 0, %s210
      %s225 = sphi 0, %s211
      %s229 = sphi 0, %s229
      %s231 = sphi 0, %s229
      %s232 = sphi 0, %s231
      %s246 = sphi 0, %s232
      %s250 = sphi 0, %s250
      %s252 = sphi 0, %s250
      %s253 = sphi 0, %s252
      %s267 = sphi 0, %s253
      %s271 = sphi 0, %s271
      %s273 = sphi 0, %s271
      %s274 = sphi 0, %s273
      %s288 = sphi 0, %s274
      %s292 = sphi 0, %s292
      %s294 = sphi 0, %s292
      %s295 = sphi 0, %s294
      %s309 = sphi 0, %s295
      %s313 = sphi 0, %s313
      %s315 = sphi 0, %s313
      %s316 = sphi 0, %s315
      %s330 = sphi 0, %s316
      %s334 = sphi 0, %s334
      %s336 = sphi 0, %s334
      %s337 = sphi 0, %s336
      %s351 = sphi 0, %s337
      %s355 = sphi 0, %s355
      %s357 = sphi 0, %s355
      %s358 = sphi 0, %s357
      %s372 = sphi 0, %s358
      %s380 = sphi 0, %s382
      %s383 = sphi 0, %s380
      %s384 = sphi 0, %s383
      %s400 = sphi 0, %s384
    $region4: #{_block_forward.1} parent=1 // loop_header_branch
      %32 = sbr.rel (%p30) target = $region8
    $region5: #{_block_forward.1} parent=1 // loop_body
      %s34 = ssub.s32 %s29, 1
      %s35 = ssub.s32 %s29, 2
      %s42 = sadd.s32 1, %s37
      %p43 = scmp.ge.s32.totalorder %s42, 1
      %s44 = scalar_select %p43, 0, %s42
      %s45 = sadd.s32 1, %s36
      %s46 = scalar_select %p43, %s45, %s36
      %p47 = scmp.ge.s32.totalorder %s46, 2
      %s48 = scalar_select %p47, 0, %s46
      %s49 = ssub.s32 %s36, %s48
      %s50 = ssub.s32 %s37, %s44
      %s51 = sor.u32 %s49, %s50
      %p52 = scmp.eq.s32.totalorder %s51, 0
      %s54 = sadd.s32 %s53, 1
      %s55 = scalar_select %p52, %s53, %s54
      %p58 = pneg %p52
      %p59 = scmp.eq.s32.totalorder %s29, 1
      %p60 = por %p58, %p59
      %p61 = scmp.ne.s32.totalorder %s53, %s56
      %p62 = scmp.eq.s32.totalorder %s29, 0
      %p63 = por %p61, %p62
      %p64 = scmp.ne.s32.totalorder %s53, %s56
      %p65 = scmp.eq.s32.totalorder %s34, 1
      %p66 = por %p64, %p65
      %p67 = scmp.ne.s32.totalorder %s56, %s57
      %p68 = scmp.eq.s32.totalorder %s34, 0
      %p69 = por %p67, %p68
      %p70 = scmp.ne.s32.totalorder %s56, %s57
      %p71 = scmp.eq.s32.totalorder %s35, 1
      %p72 = por %p70, %p71
      %p74 = scmp.ne.s32.totalorder %s57, %s73
      %p75 = scmp.eq.s32.totalorder %s35, 0
      %p76 = por %p74, %p75
      %s77 = ssub.s32 %s36, %s48
      %p78 = scmp.eq.s32.totalorder %s77, 0
      %s80 = sadd.s32 %s79, 1
      %s81 = scalar_select %p78, %s79, %s80
      %p84 = pneg %p78
      %p85 = scmp.eq.s32.totalorder %s29, 1
      %p86 = por %p84, %p85
      %p87 = scmp.ne.s32.totalorder %s79, %s82
      %p88 = scmp.eq.s32.totalorder %s29, 0
      %p89 = por %p87, %p88
      %p90 = scmp.ne.s32.totalorder %s79, %s82
      %p91 = scmp.eq.s32.totalorder %s34, 1
      %p92 = por %p90, %p91
      %p93 = scmp.ne.s32.totalorder %s82, %s83
      %p94 = scmp.eq.s32.totalorder %s34, 0
      %p95 = por %p93, %p94
      %p96 = scmp.ne.s32.totalorder %s82, %s83
      %p97 = scmp.eq.s32.totalorder %s35, 1
      %p98 = por %p96, %p97
      %p100 = scmp.ne.s32.totalorder %s83, %s99
      %p101 = scmp.eq.s32.totalorder %s35, 0
      %p102 = por %p100, %p101
      %s104 = sadd.s32 %s103, 1
      %p107 = scmp.eq.s32.totalorder %s29, 1
      %p108 = scmp.ne.s32.totalorder %s103, %s105
      %p109 = scmp.eq.s32.totalorder %s29, 0
      %p110 = por %p108, %p109
      %p111 = scmp.ne.s32.totalorder %s103, %s105
      %p112 = scmp.eq.s32.totalorder %s34, 1
      %p113 = por %p111, %p112
      %p114 = scmp.ne.s32.totalorder %s105, %s106
      %p115 = scmp.eq.s32.totalorder %s34, 0
      %p116 = por %p114, %p115
      %p117 = scmp.ne.s32.totalorder %s105, %s106
      %p118 = scmp.eq.s32.totalorder %s35, 1
      %p119 = por %p117, %p118
      %p121 = scmp.ne.s32.totalorder %s106, %s120
      %p122 = scmp.eq.s32.totalorder %s35, 0
      %p123 = por %p121, %p122
      %s125 = sadd.s32 %s124, 1
      %p128 = scmp.eq.s32.totalorder %s29, 1
      %p129 = scmp.ne.s32.totalorder %s124, %s126
      %p130 = scmp.eq.s32.totalorder %s29, 0
      %p131 = por %p129, %p130
      %p132 = scmp.ne.s32.totalorder %s124, %s126
      %p133 = scmp.eq.s32.totalorder %s34, 1
      %p134 = por %p132, %p133
      %p135 = scmp.ne.s32.totalorder %s126, %s127
      %p136 = scmp.eq.s32.totalorder %s34, 0
      %p137 = por %p135, %p136
      %p138 = scmp.ne.s32.totalorder %s126, %s127
      %p139 = scmp.eq.s32.totalorder %s35, 1
      %p140 = por %p138, %p139
      %p142 = scmp.ne.s32.totalorder %s127, %s141
      %p143 = scmp.eq.s32.totalorder %s35, 0
      %p144 = por %p142, %p143
      %s146 = sadd.s32 %s145, 1
      %p149 = scmp.eq.s32.totalorder %s29, 1
      %p150 = scmp.ne.s32.totalorder %s145, %s147
      %p151 = scmp.eq.s32.totalorder %s29, 0
      %p152 = por %p150, %p151
      %p153 = scmp.ne.s32.totalorder %s145, %s147
      %p154 = scmp.eq.s32.totalorder %s34, 1
      %p155 = por %p153, %p154
      %p156 = scmp.ne.s32.totalorder %s147, %s148
      %p157 = scmp.eq.s32.totalorder %s34, 0
      %p158 = por %p156, %p157
      %p159 = scmp.ne.s32.totalorder %s147, %s148
      %p160 = scmp.eq.s32.totalorder %s35, 1
      %p161 = por %p159, %p160
      %p163 = scmp.ne.s32.totalorder %s148, %s162
      %p164 = scmp.eq.s32.totalorder %s35, 0
      %p165 = por %p163, %p164
      %s167 = sadd.s32 %s166, 1
      %p170 = scmp.eq.s32.totalorder %s29, 1
      %p171 = scmp.ne.s32.totalorder %s166, %s168
      %p172 = scmp.eq.s32.totalorder %s29, 0
      %p173 = por %p171, %p172
      %p174 = scmp.ne.s32.totalorder %s166, %s168
      %p175 = scmp.eq.s32.totalorder %s34, 1
      %p176 = por %p174, %p175
      %p177 = scmp.ne.s32.totalorder %s168, %s169
      %p178 = scmp.eq.s32.totalorder %s34, 0
      %p179 = por %p177, %p178
      %p180 = scmp.ne.s32.totalorder %s168, %s169
      %p181 = scmp.eq.s32.totalorder %s35, 1
      %p182 = por %p180, %p181
      %p184 = scmp.ne.s32.totalorder %s169, %s183
      %p185 = scmp.eq.s32.totalorder %s35, 0
      %p186 = por %p184, %p185
      %s188 = sadd.s32 %s187, 1
      %p191 = scmp.eq.s32.totalorder %s29, 1
      %p192 = scmp.ne.s32.totalorder %s187, %s189
      %p193 = scmp.eq.s32.totalorder %s29, 0
      %p194 = por %p192, %p193
      %p195 = scmp.ne.s32.totalorder %s187, %s189
      %p196 = scmp.eq.s32.totalorder %s34, 1
      %p197 = por %p195, %p196
      %p198 = scmp.ne.s32.totalorder %s189, %s190
      %p199 = scmp.eq.s32.totalorder %s34, 0
      %p200 = por %p198, %p199
      %p201 = scmp.ne.s32.totalorder %s189, %s190
      %p202 = scmp.eq.s32.totalorder %s35, 1
      %p203 = por %p201, %p202
      %p205 = scmp.ne.s32.totalorder %s190, %s204
      %p206 = scmp.eq.s32.totalorder %s35, 0
      %p207 = por %p205, %p206
      %s209 = sadd.s32 %s208, 1
      %p212 = scmp.eq.s32.totalorder %s29, 1
      %p213 = scmp.ne.s32.totalorder %s208, %s210
      %p214 = scmp.eq.s32.totalorder %s29, 0
      %p215 = por %p213, %p214
      %p216 = scmp.ne.s32.totalorder %s208, %s210
      %p217 = scmp.eq.s32.totalorder %s34, 1
      %p218 = por %p216, %p217
      %p219 = scmp.ne.s32.totalorder %s210, %s211
      %p220 = scmp.eq.s32.totalorder %s34, 0
      %p221 = por %p219, %p220
      %p222 = scmp.ne.s32.totalorder %s210, %s211
      %p223 = scmp.eq.s32.totalorder %s35, 1
      %p224 = por %p222, %p223
      %p226 = scmp.ne.s32.totalorder %s211, %s225
      %p227 = scmp.eq.s32.totalorder %s35, 0
      %p228 = por %p226, %p227
      %s230 = sadd.s32 %s229, 1
      %p233 = scmp.eq.s32.totalorder %s29, 1
      %p234 = scmp.ne.s32.totalorder %s229, %s231
      %p235 = scmp.eq.s32.totalorder %s29, 0
      %p236 = por %p234, %p235
      %p237 = scmp.ne.s32.totalorder %s229, %s231
      %p238 = scmp.eq.s32.totalorder %s34, 1
      %p239 = por %p237, %p238
      %p240 = scmp.ne.s32.totalorder %s231, %s232
      %p241 = scmp.eq.s32.totalorder %s34, 0
      %p242 = por %p240, %p241
      %p243 = scmp.ne.s32.totalorder %s231, %s232
      %p244 = scmp.eq.s32.totalorder %s35, 1
      %p245 = por %p243, %p244
      %p247 = scmp.ne.s32.totalorder %s232, %s246
      %p248 = scmp.eq.s32.totalorder %s35, 0
      %p249 = por %p247, %p248
      %s251 = sadd.s32 %s250, 1
      %p254 = scmp.eq.s32.totalorder %s29, 1
      %p255 = scmp.ne.s32.totalorder %s250, %s252
      %p256 = scmp.eq.s32.totalorder %s29, 0
      %p257 = por %p255, %p256
      %p258 = scmp.ne.s32.totalorder %s250, %s252
      %p259 = scmp.eq.s32.totalorder %s34, 1
      %p260 = por %p258, %p259
      %p261 = scmp.ne.s32.totalorder %s252, %s253
      %p262 = scmp.eq.s32.totalorder %s34, 0
      %p263 = por %p261, %p262
      %p264 = scmp.ne.s32.totalorder %s252, %s253
      %p265 = scmp.eq.s32.totalorder %s35, 1
      %p266 = por %p264, %p265
      %p268 = scmp.ne.s32.totalorder %s253, %s267
      %p269 = scmp.eq.s32.totalorder %s35, 0
      %p270 = por %p268, %p269
      %s272 = sadd.s32 %s271, 1
      %p275 = scmp.eq.s32.totalorder %s29, 1
      %p276 = scmp.ne.s32.totalorder %s271, %s273
      %p277 = scmp.eq.s32.totalorder %s29, 0
      %p278 = por %p276, %p277
      %p279 = scmp.ne.s32.totalorder %s271, %s273
      %p280 = scmp.eq.s32.totalorder %s34, 1
      %p281 = por %p279, %p280
      %p282 = scmp.ne.s32.totalorder %s273, %s274
      %p283 = scmp.eq.s32.totalorder %s34, 0
      %p284 = por %p282, %p283
      %p285 = scmp.ne.s32.totalorder %s273, %s274
      %p286 = scmp.eq.s32.totalorder %s35, 1
      %p287 = por %p285, %p286
      %p289 = scmp.ne.s32.totalorder %s274, %s288
      %p290 = scmp.eq.s32.totalorder %s35, 0
      %p291 = por %p289, %p290
      %s293 = sadd.s32 %s292, 1
      %p296 = scmp.eq.s32.totalorder %s29, 1
      %p297 = scmp.ne.s32.totalorder %s292, %s294
      %p298 = scmp.eq.s32.totalorder %s29, 0
      %p299 = por %p297, %p298
      %p300 = scmp.ne.s32.totalorder %s292, %s294
      %p301 = scmp.eq.s32.totalorder %s34, 1
      %p302 = por %p300, %p301
      %p303 = scmp.ne.s32.totalorder %s294, %s295
      %p304 = scmp.eq.s32.totalorder %s34, 0
      %p305 = por %p303, %p304
      %p306 = scmp.ne.s32.totalorder %s294, %s295
      %p307 = scmp.eq.s32.totalorder %s35, 1
      %p308 = por %p306, %p307
      %p310 = scmp.ne.s32.totalorder %s295, %s309
      %p311 = scmp.eq.s32.totalorder %s35, 0
      %p312 = por %p310, %p311
      %s314 = sadd.s32 %s313, 1
      %p317 = scmp.eq.s32.totalorder %s29, 1
      %p318 = scmp.ne.s32.totalorder %s313, %s315
      %p319 = scmp.eq.s32.totalorder %s29, 0
      %p320 = por %p318, %p319
      %p321 = scmp.ne.s32.totalorder %s313, %s315
      %p322 = scmp.eq.s32.totalorder %s34, 1
      %p323 = por %p321, %p322
      %p324 = scmp.ne.s32.totalorder %s315, %s316
      %p325 = scmp.eq.s32.totalorder %s34, 0
      %p326 = por %p324, %p325
      %p327 = scmp.ne.s32.totalorder %s315, %s316
      %p328 = scmp.eq.s32.totalorder %s35, 1
      %p329 = por %p327, %p328
      %p331 = scmp.ne.s32.totalorder %s316, %s330
      %p332 = scmp.eq.s32.totalorder %s35, 0
      %p333 = por %p331, %p332
      %s335 = sadd.s32 %s334, 1
      %p338 = scmp.eq.s32.totalorder %s29, 1
      %p339 = scmp.ne.s32.totalorder %s334, %s336
      %p340 = scmp.eq.s32.totalorder %s29, 0
      %p341 = por %p339, %p340
      %p342 = scmp.ne.s32.totalorder %s334, %s336
      %p343 = scmp.eq.s32.totalorder %s34, 1
      %p344 = por %p342, %p343
      %p345 = scmp.ne.s32.totalorder %s336, %s337
      %p346 = scmp.eq.s32.totalorder %s34, 0
      %p347 = por %p345, %p346
      %p348 = scmp.ne.s32.totalorder %s336, %s337
      %p349 = scmp.eq.s32.totalorder %s35, 1
      %p350 = por %p348, %p349
      %p352 = scmp.ne.s32.totalorder %s337, %s351
      %p353 = scmp.eq.s32.totalorder %s35, 0
      %p354 = por %p352, %p353
      %s356 = sadd.s32 %s355, 1
      %p359 = scmp.eq.s32.totalorder %s29, 1
      %p360 = scmp.ne.s32.totalorder %s355, %s357
      %p361 = scmp.eq.s32.totalorder %s29, 0
      %p362 = por %p360, %p361
      %p363 = scmp.ne.s32.totalorder %s355, %s357
      %p364 = scmp.eq.s32.totalorder %s34, 1
      %p365 = por %p363, %p364
      %p366 = scmp.ne.s32.totalorder %s357, %s358
      %p367 = scmp.eq.s32.totalorder %s34, 0
      %p368 = por %p366, %p367
      %p369 = scmp.ne.s32.totalorder %s357, %s358
      %p370 = scmp.eq.s32.totalorder %s35, 1
      %p371 = por %p369, %p370
      %p373 = scmp.ne.s32.totalorder %s358, %s372
      %p374 = scmp.eq.s32.totalorder %s35, 0
      %p375 = por %p373, %p374
      %s376 = ssub.s32 %s36, %s48
      %s377 = ssub.s32 %s37, %s44
      %s378 = sor.u32 %s376, %s377
      %p379 = scmp.eq.s32.totalorder %s378, 0
      %s381 = sadd.s32 %s380, 1
      %s382 = scalar_select %p379, %s380, %s381
      %p385 = pneg %p379
      %p386 = scmp.eq.s32.totalorder %s29, 1
      %p387 = por %p385, %p386
      %p388 = scmp.ne.s32.totalorder %s380, %s383
      %p389 = scmp.eq.s32.totalorder %s29, 0
      %p390 = por %p388, %p389
      %p391 = scmp.ne.s32.totalorder %s380, %s383
      %p392 = scmp.eq.s32.totalorder %s34, 1
      %p393 = por %p391, %p392
      %p394 = scmp.ne.s32.totalorder %s383, %s384
      %p395 = scmp.eq.s32.totalorder %s34, 0
      %p396 = por %p394, %p395
      %p397 = scmp.ne.s32.totalorder %s383, %s384
      %p398 = scmp.eq.s32.totalorder %s35, 1
      %p399 = por %p397, %p398
      %p401 = scmp.ne.s32.totalorder %s384, %s400
      %p402 = scmp.eq.s32.totalorder %s35, 0
      %p403 = por %p401, %p402
      %p404 = scmp.le.s32.totalorder 1, %s29
      %p405 = scmp.lt.s32.totalorder %s29, 3
      %p406 = pnand %p404, %p405
      %p407 = pneg %p406
      // Predicated region
      $region9: #{_block_forward.1} parent=5 // pred_check
        _
      $region10: #{_block_forward.1} parent=5 // pred_check_branch
        %409 = sbr.rel (%p406) target = $region12
      $region11: #{_block_forward.1} parent=5 // pred_region
        %s410 = ssub.s32 %s29, 1
        // Predicated region
        $region13: #{_block_forward.1} parent=11 // pred_check
          %p411 = pneg %p116
        $region14: #{_block_forward.1} parent=11 // pred_check_branch
          %413 = sbr.rel (%p411) target = $region16
        $region15: #{_block_forward.1} parent=11 // pred_region
          %s415 = ssub.s32 16, 16
          %416 = vsyncadd [#allocation3], %s415
          %s418 = sshll.u32 [#allocation2], 4
          %s419 = int_to_ptr.vmem [resolvable:$true] %s418
          %421 = dma.hbm_to_vmem [thread:$0]  %s2, 16, %s419, [#allocation3]
        $region16: #{_block_forward.1} parent=11 // pred_fallthru
          _
        // Predicated region
        $region17: #{_block_forward.1} parent=11 // pred_check
          %p422 = pneg %p137
        $region18: #{_block_forward.1} parent=11 // pred_check_branch
          %424 = sbr.rel (%p422) target = $region20
        $region19: #{_block_forward.1} parent=11 // pred_region
          %s426 = ssub.s32 16, 16
          %427 = vsyncadd [#allocation6], %s426
          %s429 = sshll.u32 [#allocation5], 4
          %s430 = int_to_ptr.vmem [resolvable:$true] %s429
          %432 = dma.hbm_to_vmem [thread:$0]  %s3, 16, %s430, [#allocation6]
        $region20: #{_block_forward.1} parent=11 // pred_fallthru
          _
        // Predicated region
        $region21: #{_block_forward.1} parent=11 // pred_check
          %p433 = pneg %p158
        $region22: #{_block_forward.1} parent=11 // pred_check_branch
          %435 = sbr.rel (%p433) target = $region24
        $region23: #{_block_forward.1} parent=11 // pred_region
          _
        $region24: #{_block_forward.1} parent=11 // pred_fallthru
          _
        // Predicated region
        $region25: #{_block_forward.1} parent=11 // pred_check
          %p436 = pneg %p179
        $region26: #{_block_forward.1} parent=11 // pred_check_branch
          %438 = sbr.rel (%p436) target = $region28
        $region27: #{_block_forward.1} parent=11 // pred_region
          _
        $region28: #{_block_forward.1} parent=11 // pred_fallthru
          _
        // Predicated region
        $region29: #{_block_forward.1} parent=11 // pred_check
          %p439 = pneg %p200
        $region30: #{_block_forward.1} parent=11 // pred_check_branch
          %441 = sbr.rel (%p439) target = $region32
        $region31: #{_block_forward.1} parent=11 // pred_region
          _
        $region32: #{_block_forward.1} parent=11 // pred_fallthru
          _
        // Predicated region
        $region33: #{_block_forward.1} parent=11 // pred_check
          %p442 = pneg %p221
        $region34: #{_block_forward.1} parent=11 // pred_check_branch
          %444 = sbr.rel (%p442) target = $region36
        $region35: #{_block_forward.1} parent=11 // pred_region
          _
        $region36: #{_block_forward.1} parent=11 // pred_fallthru
          _
        // Predicated region
        $region37: #{_block_forward.1} parent=11 // pred_check
          %p445 = pneg %p242
        $region38: #{_block_forward.1} parent=11 // pred_check_branch
          %447 = sbr.rel (%p445) target = $region40
        $region39: #{_block_forward.1} parent=11 // pred_region
          %s449 = ssub.s32 16, 16
          %450 = vsyncadd [#allocation6], %s449
          %s452 = sshll.u32 [#allocation7], 4
          %s453 = int_to_ptr.vmem [resolvable:$true] %s452
          %455 = dma.hbm_to_vmem [thread:$0]  %s8, 16, %s453, [#allocation6]
        $region40: #{_block_forward.1} parent=11 // pred_fallthru
          _
        // Predicated region
        $region41: #{_block_forward.1} parent=11 // pred_check
          %p456 = pneg %p263
        $region42: #{_block_forward.1} parent=11 // pred_check_branch
          %458 = sbr.rel (%p456) target = $region44
        $region43: #{_block_forward.1} parent=11 // pred_region
          %s460 = ssub.s32 16, 16
          %461 = vsyncadd [#allocation9], %s460
          %s463 = sshll.u32 [#allocation8], 4
          %s464 = int_to_ptr.vmem [resolvable:$true] %s463
          %466 = dma.hbm_to_vmem [thread:$0]  %s9, 16, %s464, [#allocation9]
        $region44: #{_block_forward.1} parent=11 // pred_fallthru
          _
        // Predicated region
        $region45: #{_block_forward.1} parent=11 // pred_check
          %p467 = pneg %p284
        $region46: #{_block_forward.1} parent=11 // pred_check_branch
          %469 = sbr.rel (%p467) target = $region48
        $region47: #{_block_forward.1} parent=11 // pred_region
          %s471 = ssub.s32 16, 16
          %472 = vsyncadd [#allocation9], %s471
          %s474 = sshll.u32 [#allocation10], 4
          %s475 = int_to_ptr.vmem [resolvable:$true] %s474
          %477 = dma.hbm_to_vmem [thread:$0]  %s10, 16, %s475, [#allocation9]
        $region48: #{_block_forward.1} parent=11 // pred_fallthru
          _
        // Predicated region
        $region49: #{_block_forward.1} parent=11 // pred_check
          %p478 = pneg %p305
        $region50: #{_block_forward.1} parent=11 // pred_check_branch
          %480 = sbr.rel (%p478) target = $region52
        $region51: #{_block_forward.1} parent=11 // pred_region
          %s482 = ssub.s32 256, 256
          %483 = vsyncadd [#allocation12], %s482
          %s484 = sshll.u32 [#allocation11], 4
          %s485 = int_to_ptr.vmem [resolvable:$true] %s484
          %490 = dma.hbm_to_vmem [thread:$0]  %s11, 256, %s485, [#allocation12], 64, 64, 4
        $region52: #{_block_forward.1} parent=11 // pred_fallthru
          _
        // Predicated region
        $region53: #{_block_forward.1} parent=11 // pred_check
          %p491 = pneg %p326
        $region54: #{_block_forward.1} parent=11 // pred_check_branch
          %493 = sbr.rel (%p491) target = $region56
        $region55: #{_block_forward.1} parent=11 // pred_region
          %s495 = ssub.s32 16, 16
          %496 = vsyncadd [#allocation12], %s495
          %s498 = sshll.u32 [#allocation13], 4
          %s499 = int_to_ptr.vmem [resolvable:$true] %s498
          %501 = dma.hbm_to_vmem [thread:$0]  %s12, 16, %s499, [#allocation12]
        $region56: #{_block_forward.1} parent=11 // pred_fallthru
          _
        // Predicated region
        $region57: #{_block_forward.1} parent=11 // pred_check
          %p502 = pneg %p347
        $region58: #{_block_forward.1} parent=11 // pred_check_branch
          %504 = sbr.rel (%p502) target = $region60
        $region59: #{_block_forward.1} parent=11 // pred_region
          _
        $region60: #{_block_forward.1} parent=11 // pred_fallthru
          _
        // Predicated region
        $region61: #{_block_forward.1} parent=11 // pred_check
          %p505 = pneg %p368
        $region62: #{_block_forward.1} parent=11 // pred_check_branch
          %507 = sbr.rel (%p505) target = $region64
        $region63: #{_block_forward.1} parent=11 // pred_region
          %s509 = ssub.s32 16, 16
          %510 = vsyncadd [#allocation15], %s509
          %s512 = sshll.u32 [#allocation14], 4
          %s513 = int_to_ptr.vmem [resolvable:$true] %s512
          %515 = dma.hbm_to_vmem [thread:$0]  %s14, 16, %s513, [#allocation15]
        $region64: #{_block_forward.1} parent=11 // pred_fallthru
          _
      $region12: #{_block_forward.1} parent=5 // pred_fallthru
        _
      %p516 = scmp.lt.s32.totalorder %s29, 2
      // Predicated region
      $region65: #{_block_forward.1} parent=5 // pred_check
        %p517 = pneg %p516
      $region66: #{_block_forward.1} parent=5 // pred_check_branch
        %519 = sbr.rel (%p517) target = $region68
      $region67: #{_block_forward.1} parent=5 // pred_region
        // Predicated region
        $region69: #{_block_forward.1} parent=67 // pred_check
          %p520 = pneg %p63
        $region70: #{_block_forward.1} parent=67 // pred_check_branch
          %522 = sbr.rel (%p520) target = $region72
        $region71: #{_block_forward.1} parent=67 // pred_region
          %p523 = scmp.lt.s32.totalorder %s36, 1
          %s524 = scalar_select %p523, %s36, 1
          %p525 = scmp.lt.s32.totalorder %s37, 0
          %s526 = scalar_select %p525, %s37, 0
          %s527 = sadd.s32 %s526, %s524
          %s528 = smul.addr %s527, 8
          %s529 = scalar_lea.vmem %s0, %s528
        $region72: #{_block_forward.1} parent=67 // pred_fallthru
          _
        // Predicated region
        $region73: #{_block_forward.1} parent=67 // pred_check
          %p530 = pneg %p89
        $region74: #{_block_forward.1} parent=67 // pred_check_branch
          %532 = sbr.rel (%p530) target = $region76
        $region75: #{_block_forward.1} parent=67 // pred_region
          %p533 = scmp.lt.s32.totalorder %s36, 1
          %s534 = scalar_select %p533, %s36, 1
          %s535 = smul.addr %s534, 8
          %s536 = scalar_lea.vmem %s1, %s535
        $region76: #{_block_forward.1} parent=67 // pred_fallthru
          _
      $region68: #{_block_forward.1} parent=5 // pred_fallthru
        _
      %p537 = scmp.le.s32.totalorder 1, %s29
      %p538 = scmp.lt.s32.totalorder %s29, 3
      %p539 = pnand %p537, %p538
      %p540 = pneg %p539
      // Predicated region
      $region77: #{_block_forward.1} parent=5 // pred_check
        _
      $region78: #{_block_forward.1} parent=5 // pred_check_branch
        %542 = sbr.rel (%p539) target = $region80
      $region79: #{_block_forward.1} parent=5 // pred_region
        %s543 = ssub.s32 %s29, 1
        // Predicated region
        $region81: #{_block_forward.1} parent=79 // pred_check
          %p544 = pneg %p116
        $region82: #{_block_forward.1} parent=79 // pred_check_branch
          %546 = sbr.rel (%p544) target = $region84
        $region83: #{_block_forward.1} parent=79 // pred_region
          %547 = dma.done [#allocation3], 16
        $region84: #{_block_forward.1} parent=79 // pred_fallthru
          _
        // Predicated region
        $region85: #{_block_forward.1} parent=79 // pred_check
          %p548 = pneg %p137
        $region86: #{_block_forward.1} parent=79 // pred_check_branch
          %550 = sbr.rel (%p548) target = $region88
        $region87: #{_block_forward.1} parent=79 // pred_region
          %551 = dma.done [#allocation6], 16
        $region88: #{_block_forward.1} parent=79 // pred_fallthru
          _
        // Predicated region
        $region89: #{_block_forward.1} parent=79 // pred_check
          %p552 = pneg %p242
        $region90: #{_block_forward.1} parent=79 // pred_check_branch
          %554 = sbr.rel (%p552) target = $region92
        $region91: #{_block_forward.1} parent=79 // pred_region
          %555 = dma.done [#allocation6], 16
        $region92: #{_block_forward.1} parent=79 // pred_fallthru
          _
        // Predicated region
        $region93: #{_block_forward.1} parent=79 // pred_check
          %p556 = pneg %p263
        $region94: #{_block_forward.1} parent=79 // pred_check_branch
          %558 = sbr.rel (%p556) target = $region96
        $region95: #{_block_forward.1} parent=79 // pred_region
          %559 = dma.done [#allocation9], 16
        $region96: #{_block_forward.1} parent=79 // pred_fallthru
          _
        // Predicated region
        $region97: #{_block_forward.1} parent=79 // pred_check
          %p560 = pneg %p284
        $region98: #{_block_forward.1} parent=79 // pred_check_branch
          %562 = sbr.rel (%p560) target = $region100
        $region99: #{_block_forward.1} parent=79 // pred_region
          %563 = dma.done [#allocation9], 16
        $region100: #{_block_forward.1} parent=79 // pred_fallthru
          _
        // Predicated region
        $region101: #{_block_forward.1} parent=79 // pred_check
          %p564 = pneg %p305
        $region102: #{_block_forward.1} parent=79 // pred_check_branch
          %566 = sbr.rel (%p564) target = $region104
        $region103: #{_block_forward.1} parent=79 // pred_region
          %567 = dma.done [#allocation12], 256
        $region104: #{_block_forward.1} parent=79 // pred_fallthru
          _
        // Predicated region
        $region105: #{_block_forward.1} parent=79 // pred_check
          %p568 = pneg %p326
        $region106: #{_block_forward.1} parent=79 // pred_check_branch
          %570 = sbr.rel (%p568) target = $region108
        $region107: #{_block_forward.1} parent=79 // pred_region
          %571 = dma.done [#allocation12], 16
        $region108: #{_block_forward.1} parent=79 // pred_fallthru
          _
        // Predicated region
        $region109: #{_block_forward.1} parent=79 // pred_check
          %p572 = pneg %p368
        $region110: #{_block_forward.1} parent=79 // pred_check_branch
          %574 = sbr.rel (%p572) target = $region112
        $region111: #{_block_forward.1} parent=79 // pred_region
          %575 = dma.done [#allocation15], 16
        $region112: #{_block_forward.1} parent=79 // pred_fallthru
          _
        %p576 = scmp.lt.s32.totalorder %s38, 1
        %s577 = scalar_select %p576, %s38, 1
        %p578 = scmp.lt.s32.totalorder %s39, 0
        %s579 = scalar_select %p578, %s39, 0
        %s580 = sadd.s32 %s579, %s577
        %s581 = smul.addr %s580, 8
        %s582 = scalar_lea.vmem %s0, %s581
        %p583 = pneg %p69
        %p584 = pneg %p66
        %p585 = scmp.lt.s32.totalorder %s38, 1
        %s586 = scalar_select %p585, %s38, 1
        %s587 = smul.addr %s586, 8
        %s588 = scalar_lea.vmem %s1, %s587
        %p589 = pneg %p95
        %p590 = pneg %p92
        %p591 = pneg %p116
        %p592 = pneg %p113
        %p593 = pneg %p137
        %p594 = pneg %p134
        %p595 = pneg %p158
        %p596 = pneg %p155
        %p597 = pneg %p179
        %p598 = pneg %p176
        %p599 = pneg %p200
        %p600 = pneg %p197
        %p601 = pneg %p221
        %p602 = pneg %p218
        %p603 = pneg %p242
        %p604 = pneg %p239
        %p605 = pneg %p263
        %p606 = pneg %p260
        %p607 = pneg %p284
        %p608 = pneg %p281
        %p609 = pneg %p305
        %p610 = pneg %p302
        %p611 = pneg %p326
        %p612 = pneg %p323
        %p613 = pneg %p347
        %p614 = pneg %p344
        %p615 = pneg %p368
        %p616 = pneg %p365
        %p617 = pneg %p396
        %p618 = pneg %p393
        %s619 = sand.u32 %s383, 1
        %s620 = scalar_lea.sflag [#allocation4], %s619
        %s621 = sand.u32 %s383, 1
        %s622 = smul.addr %s621, 8
        %s623 = scalar_lea.vmem [#allocation16], %s622
        %p624 = scmp.lt.s32.totalorder %s38, 1
        %s625 = scalar_select %p624, %s38, 1
        %p626 = scmp.lt.s32.totalorder %s39, 0
        %s627 = scalar_select %p626, %s39, 0
        %s628 = sadd.s32 %s627, %s625
        %s629 = smul.addr %s628, 8
        %s630 = scalar_lea.vmem %s0, %s629
        %p631 = scmp.lt.s32.totalorder %s38, 1
        %s632 = scalar_select %p631, %s38, 1
        %s633 = smul.addr %s632, 8
        %s634 = scalar_lea.vmem %s1, %s633
        %v636 = vld [vmem:[%s630] sm:$0xff]
        %v637 = vld [vmem:[%s634] sm:$0xff]
        %v638 = vld [vmem:[#allocation2] sm:$0x1]
        %v639 = vld [vmem:[#allocation5] sm:$0x1]
        %vm640 = vcmask 261120
        %v641 = vsel %vm640, %v636, 0.0
        %642 = vadd.xlane.f32.xlu0 %v641
        %v643 = vpop.xlane.xlu0 %642
        %v644 = vrcp.pop 32.0
        %v645 = vmul.f32 %v643, %v644
        %v646 = vsub.f32 %v636, %v645
        %v647 = vmul.f32 %v646, %v646
        %v648 = vsel %vm640, %v647, 0.0
        %649 = vadd.xlane.f32.xlu0 %v648
        %v650 = vpop.xlane.xlu0 %649
        %v651 = vmul.f32 %v650, %v644
        %v652 = vadd.f32 %v651, 1e-05
        %v653 = vrsqrt.pop %v652
        %v654 = vmul.f32 %v646, %v653
        %v656 = vlaneseq
        %v657 = vshrl.u32 %v656, 7
        %v658 = vsub.s32 0, %v657
        %v659 = vrot.slane %v638, %v658
        %v661 = vmul.f32 %v654, %v659
        %v663 = vlaneseq
        %v664 = vshrl.u32 %v663, 7
        %v665 = vsub.s32 0, %v664
        %v666 = vrot.slane %v639, %v665
        %v668 = vadd.f32 %v661, %v666
        %v669 = vpack.c.bf16 %v668, %v668
        %v670 = vsel %vm640, %v637, 0.0
        %671 = vadd.xlane.f32.xlu0 %v670
        %v672 = vpop.xlane.xlu0 %671
        %v673 = vmul.f32 %v672, %v644
        %v674 = vsub.f32 %v637, %v673
        %v675 = vmul.f32 %v674, %v674
        %v676 = vsel %vm640, %v675, 0.0
        %677 = vadd.xlane.f32.xlu0 %v676
        %v678 = vpop.xlane.xlu0 %677
        %v679 = vmul.f32 %v678, %v644
        %v680 = vadd.f32 %v679, 1e-05
        %v681 = vrsqrt.pop %v680
        %v682 = vmul.f32 %v674, %v681
        %v683 = vmul.f32 %v682, %v659
        %v684 = vadd.f32 %v683, %v666
        %v685 = vpack.c.bf16 %v684, %v684
        %v686 = vld [vmem:[%s4] sm:$0xf]
        %v687 = vld [vmem:[%s4 + $0x4] sm:$0xf]
        %v688 = vld [vmem:[%s4 + $0x8] sm:$0xf]
        %v689 = vld [vmem:[%s4 + $0xc] sm:$0xf]
        %v694 = vunpack.c.l.b16 %v686
        %v695 = vunpack.c.l.b16 %v687
        %v696 = vunpack.c.l.b16 %v688
        %v697 = vunpack.c.l.b16 %v689
        %v698 = vpack.c.b16 %v695, %v694
        %v699 = vpack.c.b16 %v697, %v696
        %v703 = vsel %vm640, %v669, 0
        %705 = vmatprep.subr.bf16.mxu0 0
        %706 = vmatpush1.bf16.msra.mxu0 0
        %707 = vmatprep.subr.bf16.mxu0 0
        %708 = vmatpush1.bf16.msra.mxu0 0
        %709 = vmatprep.subr.bf16.mxu0 0
        %710 = vmatpush1.bf16.msra.mxu0 0
        %711 = vmatprep.subr.bf16.mxu0 0
        %712 = vmatpush1.bf16.msra.mxu0 0
        %713 = vmatprep.subr.bf16.mxu0 0
        %714 = vmatpush1.bf16.msra.mxu0 0
        %715 = vmatprep.subr.bf16.mxu0 0
        %716 = vmatpush1.bf16.msra.mxu0 0
        %717 = vmatprep.subr.bf16.mxu0 0
        %718 = vmatpush1.bf16.msra.mxu0 %v699
        %719 = vmatprep.subr.bf16.mxu0 0
        %720 = vmatpush1.bf16.msra.mxu0 %v698
        %721 = vmatprep.subr.bf16.mxu0 0
        %722 = vmatpush2.bf16.msra.mxu0 0
        %723 = vmatprep.subr.bf16.mxu0 0
        %724 = vmatpush2.bf16.msra.mxu0 0
        %725 = vmatprep.subr.bf16.mxu0 0
        %726 = vmatpush2.bf16.msra.mxu0 0
        %727 = vmatprep.subr.bf16.mxu0 0
        %728 = vmatpush2.bf16.msra.mxu0 0
        %729 = vmatprep.subr.bf16.mxu0 0
        %730 = vmatpush2.bf16.msra.mxu0 0
        %731 = vmatprep.subr.bf16.mxu0 0
        %732 = vmatpush2.bf16.msra.mxu0 0
        %733 = vmatprep.subr.bf16.mxu0 0
        %734 = vmatpush2.bf16.msra.mxu0 0
        %735 = vmatprep.subr.bf16.mxu0 0
        %736 = vmatpush2.bf16.msra.mxu0 0
        %737 = vmatprep.mubr.bf16.mxu0 0
        %738 = vmatmul.mubr.bf16.gmra.mxu0 %v703
        %v739 = vpop.f32.mrf.mxu0
        %v740 = vadd.f32 0.0, %v739
        %v741 = vpop.f32.mrf.mxu0
        %v742 = vpop.f32.mrf.mxu0
        %v743 = vpop.f32.mrf.mxu0
        %744 = vdwg.mxu0
        %v745 = vld [vmem:[%s5] sm:$0xf]
        %v746 = vld [vmem:[%s5 + $0x4] sm:$0xf]
        %v747 = vld [vmem:[%s5 + $0x8] sm:$0xf]
        %v748 = vld [vmem:[%s5 + $0xc] sm:$0xf]
        %v753 = vunpack.c.l.b16 %v745
        %v754 = vunpack.c.l.b16 %v746
        %v755 = vunpack.c.l.b16 %v747
        %v756 = vunpack.c.l.b16 %v748
        %v757 = vpack.c.b16 %v754, %v753
        %v758 = vpack.c.b16 %v756, %v755
        %v762 = vsel %vm640, %v685, 0
        %764 = vmatprep.subr.bf16.mxu0 0
        %765 = vmatpush1.bf16.msra.mxu0 0
        %766 = vmatprep.subr.bf16.mxu0 0
        %767 = vmatpush1.bf16.msra.mxu0 0
        %768 = vmatprep.subr.bf16.mxu0 0
        %769 = vmatpush1.bf16.msra.mxu0 0
        %770 = vmatprep.subr.bf16.mxu0 0
        %771 = vmatpush1.bf16.msra.mxu0 0
        %772 = vmatprep.subr.bf16.mxu0 0
        %773 = vmatpush1.bf16.msra.mxu0 0
        %774 = vmatprep.subr.bf16.mxu0 0
        %775 = vmatpush1.bf16.msra.mxu0 0
        %776 = vmatprep.subr.bf16.mxu0 0
        %777 = vmatpush1.bf16.msra.mxu0 %v758
        %778 = vmatprep.subr.bf16.mxu0 0
        %779 = vmatpush1.bf16.msra.mxu0 %v757
        %780 = vmatprep.subr.bf16.mxu0 0
        %781 = vmatpush2.bf16.msra.mxu0 0
        %782 = vmatprep.subr.bf16.mxu0 0
        %783 = vmatpush2.bf16.msra.mxu0 0
        %784 = vmatprep.subr.bf16.mxu0 0
        %785 = vmatpush2.bf16.msra.mxu0 0
        %786 = vmatprep.subr.bf16.mxu0 0
        %787 = vmatpush2.bf16.msra.mxu0 0
        %788 = vmatprep.subr.bf16.mxu0 0
        %789 = vmatpush2.bf16.msra.mxu0 0
        %790 = vmatprep.subr.bf16.mxu0 0
        %791 = vmatpush2.bf16.msra.mxu0 0
        %792 = vmatprep.subr.bf16.mxu0 0
        %793 = vmatpush2.bf16.msra.mxu0 0
        %794 = vmatprep.subr.bf16.mxu0 0
        %795 = vmatpush2.bf16.msra.mxu0 0
        %796 = vmatprep.mubr.bf16.mxu0 0
        %797 = vmatmul.mubr.bf16.gmra.mxu0 %v762
        %v798 = vpop.f32.mrf.mxu0
        %v799 = vadd.f32 0.0, %v798
        %v800 = vpop.f32.mrf.mxu0
        %v801 = vpop.f32.mrf.mxu0
        %v802 = vpop.f32.mrf.mxu0
        %803 = vdwg.mxu0
        %v804 = vld [vmem:[%s6] sm:$0xf]
        %v805 = vld [vmem:[%s6 + $0x4] sm:$0xf]
        %v806 = vld [vmem:[%s6 + $0x8] sm:$0xf]
        %v807 = vld [vmem:[%s6 + $0xc] sm:$0xf]
        %v812 = vunpack.c.l.b16 %v804
        %v813 = vunpack.c.l.b16 %v805
        %v814 = vunpack.c.l.b16 %v806
        %v815 = vunpack.c.l.b16 %v807
        %v816 = vpack.c.b16 %v813, %v812
        %v817 = vpack.c.b16 %v815, %v814
        %820 = vmatprep.subr.bf16.mxu0 0
        %821 = vmatpush1.bf16.msra.mxu0 0
        %822 = vmatprep.subr.bf16.mxu0 0
        %823 = vmatpush1.bf16.msra.mxu0 0
        %824 = vmatprep.subr.bf16.mxu0 0
        %825 = vmatpush1.bf16.msra.mxu0 0
        %826 = vmatprep.subr.bf16.mxu0 0
        %827 = vmatpush1.bf16.msra.mxu0 0
        %828 = vmatprep.subr.bf16.mxu0 0
        %829 = vmatpush1.bf16.msra.mxu0 0
        %830 = vmatprep.subr.bf16.mxu0 0
        %831 = vmatpush1.bf16.msra.mxu0 0
        %832 = vmatprep.subr.bf16.mxu0 0
        %833 = vmatpush1.bf16.msra.mxu0 %v817
        %834 = vmatprep.subr.bf16.mxu0 0
        %835 = vmatpush1.bf16.msra.mxu0 %v816
        %836 = vmatprep.subr.bf16.mxu0 0
        %837 = vmatpush2.bf16.msra.mxu0 0
        %838 = vmatprep.subr.bf16.mxu0 0
        %839 = vmatpush2.bf16.msra.mxu0 0
        %840 = vmatprep.subr.bf16.mxu0 0
        %841 = vmatpush2.bf16.msra.mxu0 0
        %842 = vmatprep.subr.bf16.mxu0 0
        %843 = vmatpush2.bf16.msra.mxu0 0
        %844 = vmatprep.subr.bf16.mxu0 0
        %845 = vmatpush2.bf16.msra.mxu0 0
        %846 = vmatprep.subr.bf16.mxu0 0
        %847 = vmatpush2.bf16.msra.mxu0 0
        %848 = vmatprep.subr.bf16.mxu0 0
        %849 = vmatpush2.bf16.msra.mxu0 0
        %850 = vmatprep.subr.bf16.mxu0 0
        %851 = vmatpush2.bf16.msra.mxu0 0
        %852 = vmatprep.mubr.bf16.mxu0 0
        %853 = vmatmul.mubr.bf16.gmra.mxu0 %v762
        %v854 = vpop.f32.mrf.mxu0
        %v855 = vadd.f32 0.0, %v854
        %v856 = vpop.f32.mrf.mxu0
        %v857 = vpop.f32.mrf.mxu0
        %v858 = vpop.f32.mrf.mxu0
        %859 = vdwg.mxu0
        %v860 = vpack.c.bf16 %v740, %v740
        %862 = vrot.lane.b32.xlu0 %v860, 120
        %v863 = vpop.permute.xlu0 %862
        %864 = vrot.lane.b32.xlu0 %v860, 112
        %v865 = vpop.permute.xlu0 %864
        %866 = vrot.lane.b32.xlu0 %v860, 104
        %v867 = vpop.permute.xlu0 %866
        %v869 = vunpack.c.l.s4 1983009808
        %v870 = vunpack.c.0.s8 %v869
        %v871 = vlaneseq
        %v872 = vshrl.u32 %v871, 7
        %v873 = vsub.s32 %v870, %v872
        %v874 = vrot.slane %v860, %v873
        %v877 = vunpack.c.l.s4 1983009808
        %v878 = vunpack.c.0.s8 %v877
        %v879 = vlaneseq
        %v880 = vshrl.u32 %v879, 7
        %v881 = vsub.s32 %v878, %v880
        %v882 = vrot.slane %v865, %v881
        %v883 = vcombine.low %v874, %v882
        %v884 = vcombine.high %v874, %v882
        %v886 = vunpack.c.l.s4 1934713408
        %v887 = vunpack.c.0.s8 %v886
        %v888 = vlaneseq
        %v889 = vshrl.u32 %v888, 7
        %v890 = vsub.s32 %v887, %v889
        %v891 = vrot.slane %v883, %v890
        %v893 = vunpack.c.l.s4 1934713408
        %v894 = vunpack.c.0.s8 %v893
        %v895 = vlaneseq
        %v896 = vshrl.u32 %v895, 7
        %v897 = vsub.s32 %v894, %v896
        %v898 = vrot.slane %v884, %v897
        %v899 = vcombine.high %v891, 0
        %v900 = vcombine.high %v898, 0
        %v903 = vunpack.c.l.s4 1983009808
        %v904 = vunpack.c.0.s8 %v903
        %v905 = vlaneseq
        %v906 = vshrl.u32 %v905, 7
        %v907 = vsub.s32 %v904, %v906
        %v908 = vrot.slane %v863, %v907
        %v911 = vunpack.c.l.s4 1983009808
        %v912 = vunpack.c.0.s8 %v911
        %v913 = vlaneseq
        %v914 = vshrl.u32 %v913, 7
        %v915 = vsub.s32 %v912, %v914
        %v916 = vrot.slane %v867, %v915
        %v917 = vcombine.low %v908, %v916
        %v918 = vcombine.high %v908, %v916
        %v920 = vunpack.c.l.s4 1934713408
        %v921 = vunpack.c.0.s8 %v920
        %v922 = vlaneseq
        %v923 = vshrl.u32 %v922, 7
        %v924 = vsub.s32 %v921, %v923
        %v925 = vrot.slane %v917, %v924
        %v927 = vunpack.c.l.s4 1934713408
        %v928 = vunpack.c.0.s8 %v927
        %v929 = vlaneseq
        %v930 = vshrl.u32 %v929, 7
        %v931 = vsub.s32 %v928, %v930
        %v932 = vrot.slane %v918, %v931
        %v933 = vcombine.high %v925, 0
        %v934 = vcombine.high %v932, 0
        %v937 = vpack.i.b16 %v925, %v891
        %v939 = vshrl.u32 %v891, 16
        %v940 = vshrl.u32 %v925, 16
        %v941 = vpack.i.b16 %v940, %v939
        %v945 = vpack.i.b16 %v933, %v899
        %v947 = vshrl.u32 %v899, 16
        %v948 = vshrl.u32 %v933, 16
        %v949 = vpack.i.b16 %v948, %v947
        %v953 = vpack.i.b16 %v932, %v898
        %v955 = vshrl.u32 %v898, 16
        %v956 = vshrl.u32 %v932, 16
        %v957 = vpack.i.b16 %v956, %v955
        %v961 = vpack.i.b16 %v934, %v900
        %v963 = vshrl.u32 %v900, 16
        %v964 = vshrl.u32 %v934, 16
        %v965 = vpack.i.b16 %v964, %v963
        %v967 = vcombine.low %v937, %v953
        %v969 = vunpack.c.l.s4 1983009808
        %v970 = vunpack.c.0.s8 %v969
        %v971 = vlaneseq
        %v972 = vshrl.u32 %v971, 7
        %v973 = vsub.s32 %v970, %v972
        %v974 = vrot.slane %v967, %v973
        %v975 = vcombine.low %v945, %v961
        %v977 = vunpack.c.l.s4 1983009808
        %v978 = vunpack.c.0.s8 %v977
        %v979 = vlaneseq
        %v980 = vshrl.u32 %v979, 7
        %v981 = vsub.s32 %v978, %v980
        %v982 = vrot.slane %v975, %v981
        %v983 = vcombine.low %v974, %v982
        %v985 = vunpack.c.l.s4 1934713408
        %v986 = vunpack.c.0.s8 %v985
        %v987 = vlaneseq
        %v988 = vshrl.u32 %v987, 7
        %v989 = vsub.s32 %v986, %v988
        %v990 = vrot.slane %v983, %v989
        %v991 = vcombine.high %v990, 0
        %v992 = vcombine.low %v941, %v957
        %v994 = vunpack.c.l.s4 1983009808
        %v995 = vunpack.c.0.s8 %v994
        %v996 = vlaneseq
        %v997 = vshrl.u32 %v996, 7
        %v998 = vsub.s32 %v995, %v997
        %v999 = vrot.slane %v992, %v998
        %v1000 = vcombine.low %v949, %v965
        %v1002 = vunpack.c.l.s4 1983009808
        %v1003 = vunpack.c.0.s8 %v1002
        %v1004 = vlaneseq
        %v1005 = vshrl.u32 %v1004, 7
        %v1006 = vsub.s32 %v1003, %v1005
        %v1007 = vrot.slane %v1000, %v1006
        %v1008 = vcombine.low %v999, %v1007
        %v1010 = vunpack.c.l.s4 1934713408
        %v1011 = vunpack.c.0.s8 %v1010
        %v1012 = vlaneseq
        %v1013 = vshrl.u32 %v1012, 7
        %v1014 = vsub.s32 %v1011, %v1013
        %v1015 = vrot.slane %v1008, %v1014
        %v1016 = vcombine.high %v1015, 0
        %v1019 = vpack.i.b16 %v1015, %v990
        %v1020 = vshrl.u32 %v990, 16
        %v1021 = vshrl.u32 %v1015, 16
        %v1022 = vpack.i.b16 %v1021, %v1020
        %v1025 = vpack.i.b16 %v1016, %v991
        %v1026 = vshrl.u32 %v991, 16
        %v1027 = vshrl.u32 %v1016, 16
        %v1028 = vpack.i.b16 %v1027, %v1026
        %v1029 = vpack.c.bf16 %v799, %v799
        %1031 = vrot.lane.b32.xlu0 %v1029, 120
        %v1032 = vpop.permute.xlu0 %1031
        %1033 = vrot.lane.b32.xlu0 %v1029, 112
        %v1034 = vpop.permute.xlu0 %1033
        %1035 = vrot.lane.b32.xlu0 %v1029, 104
        %v1036 = vpop.permute.xlu0 %1035
        %v1038 = vunpack.c.l.s4 1983009808
        %v1039 = vunpack.c.0.s8 %v1038
        %v1040 = vlaneseq
        %v1041 = vshrl.u32 %v1040, 7
        %v1042 = vsub.s32 %v1039, %v1041
        %v1043 = vrot.slane %v1029, %v1042
        %v1046 = vunpack.c.l.s4 1983009808
        %v1047 = vunpack.c.0.s8 %v1046
        %v1048 = vlaneseq
        %v1049 = vshrl.u32 %v1048, 7
        %v1050 = vsub.s32 %v1047, %v1049
        %v1051 = vrot.slane %v1034, %v1050
        %v1052 = vcombine.low %v1043, %v1051
        %v1053 = vcombine.high %v1043, %v1051
        %v1055 = vunpack.c.l.s4 1934713408
        %v1056 = vunpack.c.0.s8 %v1055
        %v1057 = vlaneseq
        %v1058 = vshrl.u32 %v1057, 7
        %v1059 = vsub.s32 %v1056, %v1058
        %v1060 = vrot.slane %v1052, %v1059
        %v1062 = vunpack.c.l.s4 1934713408
        %v1063 = vunpack.c.0.s8 %v1062
        %v1064 = vlaneseq
        %v1065 = vshrl.u32 %v1064, 7
        %v1066 = vsub.s32 %v1063, %v1065
        %v1067 = vrot.slane %v1053, %v1066
        %v1068 = vcombine.high %v1060, 0
        %v1069 = vcombine.high %v1067, 0
        %v1072 = vunpack.c.l.s4 1983009808
        %v1073 = vunpack.c.0.s8 %v1072
        %v1074 = vlaneseq
        %v1075 = vshrl.u32 %v1074, 7
        %v1076 = vsub.s32 %v1073, %v1075
        %v1077 = vrot.slane %v1032, %v1076
        %v1080 = vunpack.c.l.s4 1983009808
        %v1081 = vunpack.c.0.s8 %v1080
        %v1082 = vlaneseq
        %v1083 = vshrl.u32 %v1082, 7
        %v1084 = vsub.s32 %v1081, %v1083
        %v1085 = vrot.slane %v1036, %v1084
        %v1086 = vcombine.low %v1077, %v1085
        %v1087 = vcombine.high %v1077, %v1085
        %v1089 = vunpack.c.l.s4 1934713408
        %v1090 = vunpack.c.0.s8 %v1089
        %v1091 = vlaneseq
        %v1092 = vshrl.u32 %v1091, 7
        %v1093 = vsub.s32 %v1090, %v1092
        %v1094 = vrot.slane %v1086, %v1093
        %v1096 = vunpack.c.l.s4 1934713408
        %v1097 = vunpack.c.0.s8 %v1096
        %v1098 = vlaneseq
        %v1099 = vshrl.u32 %v1098, 7
        %v1100 = vsub.s32 %v1097, %v1099
        %v1101 = vrot.slane %v1087, %v1100
        %v1102 = vcombine.high %v1094, 0
        %v1103 = vcombine.high %v1101, 0
        %v1106 = vpack.i.b16 %v1094, %v1060
        %v1108 = vshrl.u32 %v1060, 16
        %v1109 = vshrl.u32 %v1094, 16
        %v1110 = vpack.i.b16 %v1109, %v1108
        %v1114 = vpack.i.b16 %v1102, %v1068
        %v1116 = vshrl.u32 %v1068, 16
        %v1117 = vshrl.u32 %v1102, 16
        %v1118 = vpack.i.b16 %v1117, %v1116
        %v1122 = vpack.i.b16 %v1101, %v1067
        %v1124 = vshrl.u32 %v1067, 16
        %v1125 = vshrl.u32 %v1101, 16
        %v1126 = vpack.i.b16 %v1125, %v1124
        %v1130 = vpack.i.b16 %v1103, %v1069
        %v1132 = vshrl.u32 %v1069, 16
        %v1133 = vshrl.u32 %v1103, 16
        %v1134 = vpack.i.b16 %v1133, %v1132
        %v1136 = vcombine.low %v1106, %v1122
        %v1138 = vunpack.c.l.s4 1983009808
        %v1139 = vunpack.c.0.s8 %v1138
        %v1140 = vlaneseq
        %v1141 = vshrl.u32 %v1140, 7
        %v1142 = vsub.s32 %v1139, %v1141
        %v1143 = vrot.slane %v1136, %v1142
        %v1144 = vcombine.low %v1114, %v1130
        %v1146 = vunpack.c.l.s4 1983009808
        %v1147 = vunpack.c.0.s8 %v1146
        %v1148 = vlaneseq
        %v1149 = vshrl.u32 %v1148, 7
        %v1150 = vsub.s32 %v1147, %v1149
        %v1151 = vrot.slane %v1144, %v1150
        %v1152 = vcombine.low %v1143, %v1151
        %v1154 = vunpack.c.l.s4 1934713408
        %v1155 = vunpack.c.0.s8 %v1154
        %v1156 = vlaneseq
        %v1157 = vshrl.u32 %v1156, 7
        %v1158 = vsub.s32 %v1155, %v1157
        %v1159 = vrot.slane %v1152, %v1158
        %v1160 = vcombine.high %v1159, 0
        %v1161 = vcombine.low %v1110, %v1126
        %v1163 = vunpack.c.l.s4 1983009808
        %v1164 = vunpack.c.0.s8 %v1163
        %v1165 = vlaneseq
        %v1166 = vshrl.u32 %v1165, 7
        %v1167 = vsub.s32 %v1164, %v1166
        %v1168 = vrot.slane %v1161, %v1167
        %v1169 = vcombine.low %v1118, %v1134
        %v1171 = vunpack.c.l.s4 1983009808
        %v1172 = vunpack.c.0.s8 %v1171
        %v1173 = vlaneseq
        %v1174 = vshrl.u32 %v1173, 7
        %v1175 = vsub.s32 %v1172, %v1174
        %v1176 = vrot.slane %v1169, %v1175
        %v1177 = vcombine.low %v1168, %v1176
        %v1179 = vunpack.c.l.s4 1934713408
        %v1180 = vunpack.c.0.s8 %v1179
        %v1181 = vlaneseq
        %v1182 = vshrl.u32 %v1181, 7
        %v1183 = vsub.s32 %v1180, %v1182
        %v1184 = vrot.slane %v1177, %v1183
        %v1185 = vcombine.high %v1184, 0
        %v1188 = vpack.i.b16 %v1184, %v1159
        %v1189 = vshrl.u32 %v1159, 16
        %v1190 = vshrl.u32 %v1184, 16
        %v1191 = vpack.i.b16 %v1190, %v1189
        %v1194 = vpack.i.b16 %v1185, %v1160
        %v1195 = vshrl.u32 %v1160, 16
        %v1196 = vshrl.u32 %v1185, 16
        %v1197 = vpack.i.b16 %v1196, %v1195
        %v1198 = vpack.c.bf16 %v855, %v855
        %1200 = vrot.lane.b32.xlu0 %v1198, 120
        %v1201 = vpop.permute.xlu0 %1200
        %1202 = vrot.lane.b32.xlu0 %v1198, 112
        %v1203 = vpop.permute.xlu0 %1202
        %1204 = vrot.lane.b32.xlu0 %v1198, 104
        %v1205 = vpop.permute.xlu0 %1204
        %v1207 = vunpack.c.l.s4 1983009808
        %v1208 = vunpack.c.0.s8 %v1207
        %v1209 = vlaneseq
        %v1210 = vshrl.u32 %v1209, 7
        %v1211 = vsub.s32 %v1208, %v1210
        %v1212 = vrot.slane %v1198, %v1211
        %v1215 = vunpack.c.l.s4 1983009808
        %v1216 = vunpack.c.0.s8 %v1215
        %v1217 = vlaneseq
        %v1218 = vshrl.u32 %v1217, 7
        %v1219 = vsub.s32 %v1216, %v1218
        %v1220 = vrot.slane %v1203, %v1219
        %v1221 = vcombine.low %v1212, %v1220
        %v1222 = vcombine.high %v1212, %v1220
        %v1224 = vunpack.c.l.s4 1934713408
        %v1225 = vunpack.c.0.s8 %v1224
        %v1226 = vlaneseq
        %v1227 = vshrl.u32 %v1226, 7
        %v1228 = vsub.s32 %v1225, %v1227
        %v1229 = vrot.slane %v1221, %v1228
        %v1231 = vunpack.c.l.s4 1934713408
        %v1232 = vunpack.c.0.s8 %v1231
        %v1233 = vlaneseq
        %v1234 = vshrl.u32 %v1233, 7
        %v1235 = vsub.s32 %v1232, %v1234
        %v1236 = vrot.slane %v1222, %v1235
        %v1237 = vcombine.high %v1229, 0
        %v1238 = vcombine.high %v1236, 0
        %v1241 = vunpack.c.l.s4 1983009808
        %v1242 = vunpack.c.0.s8 %v1241
        %v1243 = vlaneseq
        %v1244 = vshrl.u32 %v1243, 7
        %v1245 = vsub.s32 %v1242, %v1244
        %v1246 = vrot.slane %v1201, %v1245
        %v1249 = vunpack.c.l.s4 1983009808
        %v1250 = vunpack.c.0.s8 %v1249
        %v1251 = vlaneseq
        %v1252 = vshrl.u32 %v1251, 7
        %v1253 = vsub.s32 %v1250, %v1252
        %v1254 = vrot.slane %v1205, %v1253
        %v1255 = vcombine.low %v1246, %v1254
        %v1256 = vcombine.high %v1246, %v1254
        %v1258 = vunpack.c.l.s4 1934713408
        %v1259 = vunpack.c.0.s8 %v1258
        %v1260 = vlaneseq
        %v1261 = vshrl.u32 %v1260, 7
        %v1262 = vsub.s32 %v1259, %v1261
        %v1263 = vrot.slane %v1255, %v1262
        %v1265 = vunpack.c.l.s4 1934713408
        %v1266 = vunpack.c.0.s8 %v1265
        %v1267 = vlaneseq
        %v1268 = vshrl.u32 %v1267, 7
        %v1269 = vsub.s32 %v1266, %v1268
        %v1270 = vrot.slane %v1256, %v1269
        %v1271 = vcombine.high %v1263, 0
        %v1272 = vcombine.high %v1270, 0
        %v1275 = vpack.i.b16 %v1263, %v1229
        %v1277 = vshrl.u32 %v1229, 16
        %v1278 = vshrl.u32 %v1263, 16
        %v1279 = vpack.i.b16 %v1278, %v1277
        %v1283 = vpack.i.b16 %v1271, %v1237
        %v1285 = vshrl.u32 %v1237, 16
        %v1286 = vshrl.u32 %v1271, 16
        %v1287 = vpack.i.b16 %v1286, %v1285
        %v1291 = vpack.i.b16 %v1270, %v1236
        %v1293 = vshrl.u32 %v1236, 16
        %v1294 = vshrl.u32 %v1270, 16
        %v1295 = vpack.i.b16 %v1294, %v1293
        %v1299 = vpack.i.b16 %v1272, %v1238
        %v1301 = vshrl.u32 %v1238, 16
        %v1302 = vshrl.u32 %v1272, 16
        %v1303 = vpack.i.b16 %v1302, %v1301
        %v1305 = vcombine.low %v1275, %v1291
        %v1307 = vunpack.c.l.s4 1983009808
        %v1308 = vunpack.c.0.s8 %v1307
        %v1309 = vlaneseq
        %v1310 = vshrl.u32 %v1309, 7
        %v1311 = vsub.s32 %v1308, %v1310
        %v1312 = vrot.slane %v1305, %v1311
        %v1313 = vcombine.low %v1283, %v1299
        %v1315 = vunpack.c.l.s4 1983009808
        %v1316 = vunpack.c.0.s8 %v1315
        %v1317 = vlaneseq
        %v1318 = vshrl.u32 %v1317, 7
        %v1319 = vsub.s32 %v1316, %v1318
        %v1320 = vrot.slane %v1313, %v1319
        %v1321 = vcombine.low %v1312, %v1320
        %v1323 = vunpack.c.l.s4 1934713408
        %v1324 = vunpack.c.0.s8 %v1323
        %v1325 = vlaneseq
        %v1326 = vshrl.u32 %v1325, 7
        %v1327 = vsub.s32 %v1324, %v1326
        %v1328 = vrot.slane %v1321, %v1327
        %v1329 = vcombine.high %v1328, 0
        %v1330 = vcombine.low %v1279, %v1295
        %v1332 = vunpack.c.l.s4 1983009808
        %v1333 = vunpack.c.0.s8 %v1332
        %v1334 = vlaneseq
        %v1335 = vshrl.u32 %v1334, 7
        %v1336 = vsub.s32 %v1333, %v1335
        %v1337 = vrot.slane %v1330, %v1336
        %v1338 = vcombine.low %v1287, %v1303
        %v1340 = vunpack.c.l.s4 1983009808
        %v1341 = vunpack.c.0.s8 %v1340
        %v1342 = vlaneseq
        %v1343 = vshrl.u32 %v1342, 7
        %v1344 = vsub.s32 %v1341, %v1343
        %v1345 = vrot.slane %v1338, %v1344
        %v1346 = vcombine.low %v1337, %v1345
        %v1348 = vunpack.c.l.s4 1934713408
        %v1349 = vunpack.c.0.s8 %v1348
        %v1350 = vlaneseq
        %v1351 = vshrl.u32 %v1350, 7
        %v1352 = vsub.s32 %v1349, %v1351
        %v1353 = vrot.slane %v1346, %v1352
        %v1354 = vcombine.high %v1353, 0
        %v1357 = vpack.i.b16 %v1353, %v1328
        %v1358 = vshrl.u32 %v1328, 16
        %v1359 = vshrl.u32 %v1353, 16
        %v1360 = vpack.i.b16 %v1359, %v1358
        %v1363 = vpack.i.b16 %v1354, %v1329
        %v1364 = vshrl.u32 %v1329, 16
        %v1365 = vshrl.u32 %v1354, 16
        %v1366 = vpack.i.b16 %v1365, %v1364
        %vm1367 = vcmask 64512
        %v1369 = vsel %vm1367, %v1019, 0
        %v1372 = vsel %vm1367, %v1188, 0
        %1374 = vmatprep.subr.bf16.mxu0 0
        %1375 = vmatpush1.bf16.xpose.msra.mxu0 0
        %1376 = vmatprep.subr.bf16.mxu0 0
        %1377 = vmatpush1.bf16.xpose.msra.mxu0 0
        %1378 = vmatprep.subr.bf16.mxu0 0
        %1379 = vmatpush1.bf16.xpose.msra.mxu0 0
        %1380 = vmatprep.subr.bf16.mxu0 0
        %1381 = vmatpush1.bf16.xpose.msra.mxu0 0
        %1382 = vmatprep.subr.bf16.mxu0 0
        %1383 = vmatpush1.bf16.xpose.msra.mxu0 0
        %1384 = vmatprep.subr.bf16.mxu0 0
        %1385 = vmatpush1.bf16.xpose.msra.mxu0 0
        %1386 = vmatprep.subr.bf16.mxu0 0
        %1387 = vmatpush1.bf16.xpose.msra.mxu0 0
        %1388 = vmatprep.subr.bf16.mxu0 0
        %1389 = vmatpush1.bf16.xpose.msra.mxu0 %v1372
        %1390 = vmatprep.subr.bf16.mxu0 0
        %1391 = vmatpush2.bf16.xpose.msra.mxu0 0
        %1392 = vmatprep.subr.bf16.mxu0 0
        %1393 = vmatpush2.bf16.xpose.msra.mxu0 0
        %1394 = vmatprep.subr.bf16.mxu0 0
        %1395 = vmatpush2.bf16.xpose.msra.mxu0 0
        %1396 = vmatprep.subr.bf16.mxu0 0
        %1397 = vmatpush2.bf16.xpose.msra.mxu0 0
        %1398 = vmatprep.subr.bf16.mxu0 0
        %1399 = vmatpush2.bf16.xpose.msra.mxu0 0
        %1400 = vmatprep.subr.bf16.mxu0 0
        %1401 = vmatpush2.bf16.xpose.msra.mxu0 0
        %1402 = vmatprep.subr.bf16.mxu0 0
        %1403 = vmatpush2.bf16.xpose.msra.mxu0 0
        %1404 = vmatprep.subr.bf16.mxu0 0
        %1405 = vmatpush2.bf16.xpose.msra.mxu0 0
        %1406 = vmatprep.mubr.bf16.mxu0 0
        %1407 = vmatmul.mubr.bf16.gmra.mxu0 %v1369
        %v1408 = vpop.f32.mrf.mxu0
        %v1409 = vadd.f32 0.0, %v1408
        %v1410 = vpop.f32.mrf.mxu0
        %v1411 = vpop.f32.mrf.mxu0
        %v1412 = vpop.f32.mrf.mxu0
        %1413 = vdwg.mxu0
        %v1415 = vsel %vm1367, %v1022, 0
        %v1418 = vsel %vm1367, %v1191, 0
        %1420 = vmatprep.subr.bf16.mxu0 0
        %1421 = vmatpush1.bf16.xpose.msra.mxu0 0
        %1422 = vmatprep.subr.bf16.mxu0 0
        %1423 = vmatpush1.bf16.xpose.msra.mxu0 0
        %1424 = vmatprep.subr.bf16.mxu0 0
        %1425 = vmatpush1.bf16.xpose.msra.mxu0 0
        %1426 = vmatprep.subr.bf16.mxu0 0
        %1427 = vmatpush1.bf16.xpose.msra.mxu0 0
        %1428 = vmatprep.subr.bf16.mxu0 0
        %1429 = vmatpush1.bf16.xpose.msra.mxu0 0
        %1430 = vmatprep.subr.bf16.mxu0 0
        %1431 = vmatpush1.bf16.xpose.msra.mxu0 0
        %1432 = vmatprep.subr.bf16.mxu0 0
        %1433 = vmatpush1.bf16.xpose.msra.mxu0 0
        %1434 = vmatprep.subr.bf16.mxu0 0
        %1435 = vmatpush1.bf16.xpose.msra.mxu0 %v1418
        %1436 = vmatprep.subr.bf16.mxu0 0
        %1437 = vmatpush2.bf16.xpose.msra.mxu0 0
        %1438 = vmatprep.subr.bf16.mxu0 0
        %1439 = vmatpush2.bf16.xpose.msra.mxu0 0
        %1440 = vmatprep.subr.bf16.mxu0 0
        %1441 = vmatpush2.bf16.xpose.msra.mxu0 0
        %1442 = vmatprep.subr.bf16.mxu0 0
        %1443 = vmatpush2.bf16.xpose.msra.mxu0 0
        %1444 = vmatprep.subr.bf16.mxu0 0
        %1445 = vmatpush2.bf16.xpose.msra.mxu0 0
        %1446 = vmatprep.subr.bf16.mxu0 0
        %1447 = vmatpush2.bf16.xpose.msra.mxu0 0
        %1448 = vmatprep.subr.bf16.mxu0 0
        %1449 = vmatpush2.bf16.xpose.msra.mxu0 0
        %1450 = vmatprep.subr.bf16.mxu0 0
        %1451 = vmatpush2.bf16.xpose.msra.mxu0 0
        %1452 = vmatprep.mubr.bf16.mxu0 0
        %1453 = vmatmul.mubr.bf16.gmra.mxu0 %v1415
        %v1454 = vpop.f32.mrf.mxu0
        %v1455 = vadd.f32 0.0, %v1454
        %v1456 = vpop.f32.mrf.mxu0
        %v1457 = vpop.f32.mrf.mxu0
        %v1458 = vpop.f32.mrf.mxu0
        %1459 = vdwg.mxu0
        %v1461 = vsel %vm1367, %v1025, 0
        %v1464 = vsel %vm1367, %v1194, 0
        %1466 = vmatprep.subr.bf16.mxu0 0
        %1467 = vmatpush1.bf16.xpose.msra.mxu0 0
        %1468 = vmatprep.subr.bf16.mxu0 0
        %1469 = vmatpush1.bf16.xpose.msra.mxu0 0
        %1470 = vmatprep.subr.bf16.mxu0 0
        %1471 = vmatpush1.bf16.xpose.msra.mxu0 0
        %1472 = vmatprep.subr.bf16.mxu0 0
        %1473 = vmatpush1.bf16.xpose.msra.mxu0 0
        %1474 = vmatprep.subr.bf16.mxu0 0
        %1475 = vmatpush1.bf16.xpose.msra.mxu0 0
        %1476 = vmatprep.subr.bf16.mxu0 0
        %1477 = vmatpush1.bf16.xpose.msra.mxu0 0
        %1478 = vmatprep.subr.bf16.mxu0 0
        %1479 = vmatpush1.bf16.xpose.msra.mxu0 0
        %1480 = vmatprep.subr.bf16.mxu0 0
        %1481 = vmatpush1.bf16.xpose.msra.mxu0 %v1464
        %1482 = vmatprep.subr.bf16.mxu0 0
        %1483 = vmatpush2.bf16.xpose.msra.mxu0 0
        %1484 = vmatprep.subr.bf16.mxu0 0
        %1485 = vmatpush2.bf16.xpose.msra.mxu0 0
        %1486 = vmatprep.subr.bf16.mxu0 0
        %1487 = vmatpush2.bf16.xpose.msra.mxu0 0
        %1488 = vmatprep.subr.bf16.mxu0 0
        %1489 = vmatpush2.bf16.xpose.msra.mxu0 0
        %1490 = vmatprep.subr.bf16.mxu0 0
        %1491 = vmatpush2.bf16.xpose.msra.mxu0 0
        %1492 = vmatprep.subr.bf16.mxu0 0
        %1493 = vmatpush2.bf16.xpose.msra.mxu0 0
        %1494 = vmatprep.subr.bf16.mxu0 0
        %1495 = vmatpush2.bf16.xpose.msra.mxu0 0
        %1496 = vmatprep.subr.bf16.mxu0 0
        %1497 = vmatpush2.bf16.xpose.msra.mxu0 0
        %1498 = vmatprep.mubr.bf16.mxu0 0
        %1499 = vmatmul.mubr.bf16.gmra.mxu0 %v1461
        %v1500 = vpop.f32.mrf.mxu0
        %v1501 = vadd.f32 0.0, %v1500
        %v1502 = vpop.f32.mrf.mxu0
        %v1503 = vpop.f32.mrf.mxu0
        %v1504 = vpop.f32.mrf.mxu0
        %1505 = vdwg.mxu0
        %v1507 = vsel %vm1367, %v1028, 0
        %v1510 = vsel %vm1367, %v1197, 0
        %1512 = vmatprep.subr.bf16.mxu0 0
        %1513 = vmatpush1.bf16.xpose.msra.mxu0 0
        %1514 = vmatprep.subr.bf16.mxu0 0
        %1515 = vmatpush1.bf16.xpose.msra.mxu0 0
        %1516 = vmatprep.subr.bf16.mxu0 0
        %1517 = vmatpush1.bf16.xpose.msra.mxu0 0
        %1518 = vmatprep.subr.bf16.mxu0 0
        %1519 = vmatpush1.bf16.xpose.msra.mxu0 0
        %1520 = vmatprep.subr.bf16.mxu0 0
        %1521 = vmatpush1.bf16.xpose.msra.mxu0 0
        %1522 = vmatprep.subr.bf16.mxu0 0
        %1523 = vmatpush1.bf16.xpose.msra.mxu0 0
        %1524 = vmatprep.subr.bf16.mxu0 0
        %1525 = vmatpush1.bf16.xpose.msra.mxu0 0
        %1526 = vmatprep.subr.bf16.mxu0 0
        %1527 = vmatpush1.bf16.xpose.msra.mxu0 %v1510
        %1528 = vmatprep.subr.bf16.mxu0 0
        %1529 = vmatpush2.bf16.xpose.msra.mxu0 0
        %1530 = vmatprep.subr.bf16.mxu0 0
        %1531 = vmatpush2.bf16.xpose.msra.mxu0 0
        %1532 = vmatprep.subr.bf16.mxu0 0
        %1533 = vmatpush2.bf16.xpose.msra.mxu0 0
        %1534 = vmatprep.subr.bf16.mxu0 0
        %1535 = vmatpush2.bf16.xpose.msra.mxu0 0
        %1536 = vmatprep.subr.bf16.mxu0 0
        %1537 = vmatpush2.bf16.xpose.msra.mxu0 0
        %1538 = vmatprep.subr.bf16.mxu0 0
        %1539 = vmatpush2.bf16.xpose.msra.mxu0 0
        %1540 = vmatprep.subr.bf16.mxu0 0
        %1541 = vmatpush2.bf16.xpose.msra.mxu0 0
        %1542 = vmatprep.subr.bf16.mxu0 0
        %1543 = vmatpush2.bf16.xpose.msra.mxu0 0
        %1544 = vmatprep.mubr.bf16.mxu0 0
        %1545 = vmatmul.mubr.bf16.gmra.mxu0 %v1507
        %v1546 = vpop.f32.mrf.mxu0
        %v1547 = vadd.f32 0.0, %v1546
        %v1548 = vpop.f32.mrf.mxu0
        %v1549 = vpop.f32.mrf.mxu0
        %v1550 = vpop.f32.mrf.mxu0
        %1551 = vdwg.mxu0
        %v1552 = vsel %vm1367, %v1409, -inf
        %1553 = vmax.xlane.f32.xlu0 %v1552
        %v1554 = vpop.xlane.xlu0 %1553
        %v1555 = vsel %vm1367, %v1455, -inf
        %1556 = vmax.xlane.f32.xlu0 %v1555
        %v1557 = vpop.xlane.xlu0 %1556
        %v1558 = vsel %vm1367, %v1501, -inf
        %1559 = vmax.xlane.f32.xlu0 %v1558
        %v1560 = vpop.xlane.xlu0 %1559
        %v1561 = vsel %vm1367, %v1547, -inf
        %1562 = vmax.xlane.f32.xlu0 %v1561
        %v1563 = vpop.xlane.xlu0 %1562
        %v1564 = vsub.f32 %v1409, %v1554
        %v1565 = vsub.f32 %v1455, %v1557
        %v1566 = vsub.f32 %v1501, %v1560
        %v1567 = vsub.f32 %v1547, %v1563
        %v1568 = vmul.f32 %v1564, 1.442695
        %v1569 = vpow.pop %v1568
        %v1570 = vmul.f32 %v1565, 1.442695
        %v1571 = vpow.pop %v1570
        %v1572 = vmul.f32 %v1566, 1.442695
        %v1573 = vpow.pop %v1572
        %v1574 = vmul.f32 %v1567, 1.442695
        %v1575 = vpow.pop %v1574
        %v1576 = vsel %vm1367, %v1569, 0.0
        %1577 = vadd.xlane.f32.xlu0 %v1576
        %v1578 = vpop.xlane.xlu0 %1577
        %v1579 = vsel %vm1367, %v1571, 0.0
        %1580 = vadd.xlane.f32.xlu0 %v1579
        %v1581 = vpop.xlane.xlu0 %1580
        %v1582 = vsel %vm1367, %v1573, 0.0
        %1583 = vadd.xlane.f32.xlu0 %v1582
        %v1584 = vpop.xlane.xlu0 %1583
        %v1585 = vsel %vm1367, %v1575, 0.0
        %1586 = vadd.xlane.f32.xlu0 %v1585
        %v1587 = vpop.xlane.xlu0 %1586
        %v1588 = vrcp.pop %v1578
        %v1589 = vrcp.pop %v1581
        %v1590 = vrcp.pop %v1584
        %v1591 = vrcp.pop %v1587
        %v1592 = vmul.f32 %v1569, %v1588
        %v1593 = vmul.f32 %v1571, %v1589
        %v1594 = vmul.f32 %v1573, %v1590
        %v1595 = vmul.f32 %v1575, %v1591
        %v1596 = vpack.c.bf16 %v1592, %v1592
        %v1597 = vpack.c.bf16 %v1593, %v1593
        %v1598 = vpack.c.bf16 %v1594, %v1594
        %v1599 = vpack.c.bf16 %v1595, %v1595
        %v1601 = vsel %vm1367, %v1596, 0
        %vm1603 = vcmask 1043456
        %v1605 = vsel %vm1603, %v1357, 0
        %1607 = vmatprep.subr.bf16.mxu0 0
        %1608 = vmatpush1.bf16.msra.mxu0 0
        %1609 = vmatprep.subr.bf16.mxu0 0
        %1610 = vmatpush1.bf16.msra.mxu0 0
        %1611 = vmatprep.subr.bf16.mxu0 0
        %1612 = vmatpush1.bf16.msra.mxu0 0
        %1613 = vmatprep.subr.bf16.mxu0 0
        %1614 = vmatpush1.bf16.msra.mxu0 0
        %1615 = vmatprep.subr.bf16.mxu0 0
        %1616 = vmatpush1.bf16.msra.mxu0 0
        %1617 = vmatprep.subr.bf16.mxu0 0
        %1618 = vmatpush1.bf16.msra.mxu0 0
        %1619 = vmatprep.subr.bf16.mxu0 0
        %1620 = vmatpush1.bf16.msra.mxu0 0
        %1621 = vmatprep.subr.bf16.mxu0 0
        %1622 = vmatpush1.bf16.msra.mxu0 %v1605
        %1623 = vmatprep.subr.bf16.mxu0 0
        %1624 = vmatpush2.bf16.msra.mxu0 0
        %1625 = vmatprep.subr.bf16.mxu0 0
        %1626 = vmatpush2.bf16.msra.mxu0 0
        %1627 = vmatprep.subr.bf16.mxu0 0
        %1628 = vmatpush2.bf16.msra.mxu0 0
        %1629 = vmatprep.subr.bf16.mxu0 0
        %1630 = vmatpush2.bf16.msra.mxu0 0
        %1631 = vmatprep.subr.bf16.mxu0 0
        %1632 = vmatpush2.bf16.msra.mxu0 0
        %1633 = vmatprep.subr.bf16.mxu0 0
        %1634 = vmatpush2.bf16.msra.mxu0 0
        %1635 = vmatprep.subr.bf16.mxu0 0
        %1636 = vmatpush2.bf16.msra.mxu0 0
        %1637 = vmatprep.subr.bf16.mxu0 0
        %1638 = vmatpush2.bf16.msra.mxu0 0
        %1639 = vmatprep.mubr.bf16.mxu0 0
        %1640 = vmatmul.mubr.bf16.gmra.mxu0 %v1601
        %v1641 = vpop.f32.mrf.mxu0
        %v1642 = vadd.f32 0.0, %v1641
        %v1643 = vpop.f32.mrf.mxu0
        %v1644 = vpop.f32.mrf.mxu0
        %v1645 = vpop.f32.mrf.mxu0
        %1646 = vdwg.mxu0
        %v1648 = vsel %vm1367, %v1597, 0
        %v1651 = vsel %vm1603, %v1360, 0
        %1653 = vmatprep.subr.bf16.mxu0 0
        %1654 = vmatpush1.bf16.msra.mxu0 0
        %1655 = vmatprep.subr.bf16.mxu0 0
        %1656 = vmatpush1.bf16.msra.mxu0 0
        %1657 = vmatprep.subr.bf16.mxu0 0
        %1658 = vmatpush1.bf16.msra.mxu0 0
        %1659 = vmatprep.subr.bf16.mxu0 0
        %1660 = vmatpush1.bf16.msra.mxu0 0
        %1661 = vmatprep.subr.bf16.mxu0 0
        %1662 = vmatpush1.bf16.msra.mxu0 0
        %1663 = vmatprep.subr.bf16.mxu0 0
        %1664 = vmatpush1.bf16.msra.mxu0 0
        %1665 = vmatprep.subr.bf16.mxu0 0
        %1666 = vmatpush1.bf16.msra.mxu0 0
        %1667 = vmatprep.subr.bf16.mxu0 0
        %1668 = vmatpush1.bf16.msra.mxu0 %v1651
        %1669 = vmatprep.subr.bf16.mxu0 0
        %1670 = vmatpush2.bf16.msra.mxu0 0
        %1671 = vmatprep.subr.bf16.mxu0 0
        %1672 = vmatpush2.bf16.msra.mxu0 0
        %1673 = vmatprep.subr.bf16.mxu0 0
        %1674 = vmatpush2.bf16.msra.mxu0 0
        %1675 = vmatprep.subr.bf16.mxu0 0
        %1676 = vmatpush2.bf16.msra.mxu0 0
        %1677 = vmatprep.subr.bf16.mxu0 0
        %1678 = vmatpush2.bf16.msra.mxu0 0
        %1679 = vmatprep.subr.bf16.mxu0 0
        %1680 = vmatpush2.bf16.msra.mxu0 0
        %1681 = vmatprep.subr.bf16.mxu0 0
        %1682 = vmatpush2.bf16.msra.mxu0 0
        %1683 = vmatprep.subr.bf16.mxu0 0
        %1684 = vmatpush2.bf16.msra.mxu0 0
        %1685 = vmatprep.mubr.bf16.mxu0 0
        %1686 = vmatmul.mubr.bf16.gmra.mxu0 %v1648
        %v1687 = vpop.f32.mrf.mxu0
        %v1688 = vadd.f32 0.0, %v1687
        %v1689 = vpop.f32.mrf.mxu0
        %v1690 = vpop.f32.mrf.mxu0
        %v1691 = vpop.f32.mrf.mxu0
        %1692 = vdwg.mxu0
        %v1694 = vsel %vm1367, %v1598, 0
        %v1697 = vsel %vm1603, %v1363, 0
        %1699 = vmatprep.subr.bf16.mxu0 0
        %1700 = vmatpush1.bf16.msra.mxu0 0
        %1701 = vmatprep.subr.bf16.mxu0 0
        %1702 = vmatpush1.bf16.msra.mxu0 0
        %1703 = vmatprep.subr.bf16.mxu0 0
        %1704 = vmatpush1.bf16.msra.mxu0 0
        %1705 = vmatprep.subr.bf16.mxu0 0
        %1706 = vmatpush1.bf16.msra.mxu0 0
        %1707 = vmatprep.subr.bf16.mxu0 0
        %1708 = vmatpush1.bf16.msra.mxu0 0
        %1709 = vmatprep.subr.bf16.mxu0 0
        %1710 = vmatpush1.bf16.msra.mxu0 0
        %1711 = vmatprep.subr.bf16.mxu0 0
        %1712 = vmatpush1.bf16.msra.mxu0 0
        %1713 = vmatprep.subr.bf16.mxu0 0
        %1714 = vmatpush1.bf16.msra.mxu0 %v1697
        %1715 = vmatprep.subr.bf16.mxu0 0
        %1716 = vmatpush2.bf16.msra.mxu0 0
        %1717 = vmatprep.subr.bf16.mxu0 0
        %1718 = vmatpush2.bf16.msra.mxu0 0
        %1719 = vmatprep.subr.bf16.mxu0 0
        %1720 = vmatpush2.bf16.msra.mxu0 0
        %1721 = vmatprep.subr.bf16.mxu0 0
        %1722 = vmatpush2.bf16.msra.mxu0 0
        %1723 = vmatprep.subr.bf16.mxu0 0
        %1724 = vmatpush2.bf16.msra.mxu0 0
        %1725 = vmatprep.subr.bf16.mxu0 0
        %1726 = vmatpush2.bf16.msra.mxu0 0
        %1727 = vmatprep.subr.bf16.mxu0 0
        %1728 = vmatpush2.bf16.msra.mxu0 0
        %1729 = vmatprep.subr.bf16.mxu0 0
        %1730 = vmatpush2.bf16.msra.mxu0 0
        %1731 = vmatprep.mubr.bf16.mxu0 0
        %1732 = vmatmul.mubr.bf16.gmra.mxu0 %v1694
        %v1733 = vpop.f32.mrf.mxu0
        %v1734 = vadd.f32 0.0, %v1733
        %v1735 = vpop.f32.mrf.mxu0
        %v1736 = vpop.f32.mrf.mxu0
        %v1737 = vpop.f32.mrf.mxu0
        %1738 = vdwg.mxu0
        %v1740 = vsel %vm1367, %v1599, 0
        %v1743 = vsel %vm1603, %v1366, 0
        %1745 = vmatprep.subr.bf16.mxu0 0
        %1746 = vmatpush1.bf16.msra.mxu0 0
        %1747 = vmatprep.subr.bf16.mxu0 0
        %1748 = vmatpush1.bf16.msra.mxu0 0
        %1749 = vmatprep.subr.bf16.mxu0 0
        %1750 = vmatpush1.bf16.msra.mxu0 0
        %1751 = vmatprep.subr.bf16.mxu0 0
        %1752 = vmatpush1.bf16.msra.mxu0 0
        %1753 = vmatprep.subr.bf16.mxu0 0
        %1754 = vmatpush1.bf16.msra.mxu0 0
        %1755 = vmatprep.subr.bf16.mxu0 0
        %1756 = vmatpush1.bf16.msra.mxu0 0
        %1757 = vmatprep.subr.bf16.mxu0 0
        %1758 = vmatpush1.bf16.msra.mxu0 0
        %1759 = vmatprep.subr.bf16.mxu0 0
        %1760 = vmatpush1.bf16.msra.mxu0 %v1743
        %1761 = vmatprep.subr.bf16.mxu0 0
        %1762 = vmatpush2.bf16.msra.mxu0 0
        %1763 = vmatprep.subr.bf16.mxu0 0
        %1764 = vmatpush2.bf16.msra.mxu0 0
        %1765 = vmatprep.subr.bf16.mxu0 0
        %1766 = vmatpush2.bf16.msra.mxu0 0
        %1767 = vmatprep.subr.bf16.mxu0 0
        %1768 = vmatpush2.bf16.msra.mxu0 0
        %1769 = vmatprep.subr.bf16.mxu0 0
        %1770 = vmatpush2.bf16.msra.mxu0 0
        %1771 = vmatprep.subr.bf16.mxu0 0
        %1772 = vmatpush2.bf16.msra.mxu0 0
        %1773 = vmatprep.subr.bf16.mxu0 0
        %1774 = vmatpush2.bf16.msra.mxu0 0
        %1775 = vmatprep.subr.bf16.mxu0 0
        %1776 = vmatpush2.bf16.msra.mxu0 0
        %1777 = vmatprep.mubr.bf16.mxu0 0
        %1778 = vmatmul.mubr.bf16.gmra.mxu0 %v1740
        %v1779 = vpop.f32.mrf.mxu0
        %v1780 = vadd.f32 0.0, %v1779
        %v1781 = vpop.f32.mrf.mxu0
        %v1782 = vpop.f32.mrf.mxu0
        %v1783 = vpop.f32.mrf.mxu0
        %1784 = vdwg.mxu0
        %v1785 = vpack.c.bf16 %v1642, %v1642
        %v1787 = vunpack.c.l.s4 1983009808
        %v1788 = vunpack.c.0.s8 %v1787
        %v1789 = vlaneseq
        %v1790 = vshrl.u32 %v1789, 7
        %v1791 = vsub.s32 %v1788, %v1790
        %v1792 = vrot.slane %v1785, %v1791
        %v1793 = vpack.c.bf16 %v1734, %v1734
        %v1795 = vunpack.c.l.s4 1983009808
        %v1796 = vunpack.c.0.s8 %v1795
        %v1797 = vlaneseq
        %v1798 = vshrl.u32 %v1797, 7
        %v1799 = vsub.s32 %v1796, %v1798
        %v1800 = vrot.slane %v1793, %v1799
        %v1801 = vcombine.low %v1792, %v1800
        %v1802 = vcombine.high %v1792, %v1800
        %v1804 = vunpack.c.l.s4 1934713408
        %v1805 = vunpack.c.0.s8 %v1804
        %v1806 = vlaneseq
        %v1807 = vshrl.u32 %v1806, 7
        %v1808 = vsub.s32 %v1805, %v1807
        %v1809 = vrot.slane %v1801, %v1808
        %v1811 = vunpack.c.l.s4 1934713408
        %v1812 = vunpack.c.0.s8 %v1811
        %v1813 = vlaneseq
        %v1814 = vshrl.u32 %v1813, 7
        %v1815 = vsub.s32 %v1812, %v1814
        %v1816 = vrot.slane %v1802, %v1815
        %v1817 = vcombine.high %v1809, 0
        %v1818 = vcombine.high %v1816, 0
        %v1819 = vpack.c.bf16 %v1688, %v1688
        %v1821 = vunpack.c.l.s4 1983009808
        %v1822 = vunpack.c.0.s8 %v1821
        %v1823 = vlaneseq
        %v1824 = vshrl.u32 %v1823, 7
        %v1825 = vsub.s32 %v1822, %v1824
        %v1826 = vrot.slane %v1819, %v1825
        %v1827 = vpack.c.bf16 %v1780, %v1780
        %v1829 = vunpack.c.l.s4 1983009808
        %v1830 = vunpack.c.0.s8 %v1829
        %v1831 = vlaneseq
        %v1832 = vshrl.u32 %v1831, 7
        %v1833 = vsub.s32 %v1830, %v1832
        %v1834 = vrot.slane %v1827, %v1833
        %v1835 = vcombine.low %v1826, %v1834
        %v1836 = vcombine.high %v1826, %v1834
        %v1838 = vunpack.c.l.s4 1934713408
        %v1839 = vunpack.c.0.s8 %v1838
        %v1840 = vlaneseq
        %v1841 = vshrl.u32 %v1840, 7
        %v1842 = vsub.s32 %v1839, %v1841
        %v1843 = vrot.slane %v1835, %v1842
        %v1845 = vunpack.c.l.s4 1934713408
        %v1846 = vunpack.c.0.s8 %v1845
        %v1847 = vlaneseq
        %v1848 = vshrl.u32 %v1847, 7
        %v1849 = vsub.s32 %v1846, %v1848
        %v1850 = vrot.slane %v1836, %v1849
        %v1851 = vcombine.high %v1843, 0
        %v1852 = vcombine.high %v1850, 0
        %v1855 = vpack.i.b16 %v1843, %v1809
        %v1857 = vshrl.u32 %v1809, 16
        %v1858 = vshrl.u32 %v1843, 16
        %v1859 = vpack.i.b16 %v1858, %v1857
        %v1863 = vpack.i.b16 %v1851, %v1817
        %v1865 = vshrl.u32 %v1817, 16
        %v1866 = vshrl.u32 %v1851, 16
        %v1867 = vpack.i.b16 %v1866, %v1865
        %v1871 = vpack.i.b16 %v1850, %v1816
        %v1873 = vshrl.u32 %v1816, 16
        %v1874 = vshrl.u32 %v1850, 16
        %v1875 = vpack.i.b16 %v1874, %v1873
        %v1879 = vpack.i.b16 %v1852, %v1818
        %v1881 = vshrl.u32 %v1818, 16
        %v1882 = vshrl.u32 %v1852, 16
        %v1883 = vpack.i.b16 %v1882, %v1881
        %v1885 = vcombine.low %v1855, %v1871
        %v1887 = vunpack.c.l.s4 1983009808
        %v1888 = vunpack.c.0.s8 %v1887
        %v1889 = vlaneseq
        %v1890 = vshrl.u32 %v1889, 7
        %v1891 = vsub.s32 %v1888, %v1890
        %v1892 = vrot.slane %v1885, %v1891
        %v1893 = vcombine.low %v1863, %v1879
        %v1895 = vunpack.c.l.s4 1983009808
        %v1896 = vunpack.c.0.s8 %v1895
        %v1897 = vlaneseq
        %v1898 = vshrl.u32 %v1897, 7
        %v1899 = vsub.s32 %v1896, %v1898
        %v1900 = vrot.slane %v1893, %v1899
        %v1901 = vcombine.low %v1892, %v1900
        %v1903 = vunpack.c.l.s4 1934713408
        %v1904 = vunpack.c.0.s8 %v1903
        %v1905 = vlaneseq
        %v1906 = vshrl.u32 %v1905, 7
        %v1907 = vsub.s32 %v1904, %v1906
        %v1908 = vrot.slane %v1901, %v1907
        %v1909 = vcombine.high %v1908, 0
        %v1910 = vcombine.low %v1859, %v1875
        %v1912 = vunpack.c.l.s4 1983009808
        %v1913 = vunpack.c.0.s8 %v1912
        %v1914 = vlaneseq
        %v1915 = vshrl.u32 %v1914, 7
        %v1916 = vsub.s32 %v1913, %v1915
        %v1917 = vrot.slane %v1910, %v1916
        %v1918 = vcombine.low %v1867, %v1883
        %v1920 = vunpack.c.l.s4 1983009808
        %v1921 = vunpack.c.0.s8 %v1920
        %v1922 = vlaneseq
        %v1923 = vshrl.u32 %v1922, 7
        %v1924 = vsub.s32 %v1921, %v1923
        %v1925 = vrot.slane %v1918, %v1924
        %v1926 = vcombine.low %v1917, %v1925
        %v1928 = vunpack.c.l.s4 1934713408
        %v1929 = vunpack.c.0.s8 %v1928
        %v1930 = vlaneseq
        %v1931 = vshrl.u32 %v1930, 7
        %v1932 = vsub.s32 %v1929, %v1931
        %v1933 = vrot.slane %v1926, %v1932
        %v1934 = vcombine.high %v1933, 0
        %v1937 = vpack.i.b16 %v1933, %v1908
        %v1938 = vshrl.u32 %v1908, 16
        %v1939 = vshrl.u32 %v1933, 16
        %v1940 = vpack.i.b16 %v1939, %v1938
        %v1943 = vpack.i.b16 %v1934, %v1909
        %v1944 = vshrl.u32 %v1909, 16
        %v1945 = vshrl.u32 %v1934, 16
        %v1946 = vpack.i.b16 %v1945, %v1944
        %1947 = vrot.lane.b32.xlu0 %v1940, 8
        %v1948 = vpop.permute.xlu0 %1947
        %1949 = vrot.lane.b32.xlu0 %v1943, 16
        %v1950 = vpop.permute.xlu0 %1949
        %1951 = vrot.lane.b32.xlu0 %v1946, 24
        %v1952 = vpop.permute.xlu0 %1951
        %v1955 = vsel %vm1367, %v1937, %v1948
        %vm1956 = vcmask 130048
        %v1958 = vsel %vm1956, %v1955, %v1950
        %vm1959 = vcmask 195584
        %v1961 = vsel %vm1959, %v1958, %v1952
        %v1962 = vld [vmem:[%s7] sm:$0xf]
        %v1963 = vld [vmem:[%s7 + $0x4] sm:$0xf]
        %v1964 = vld [vmem:[%s7 + $0x8] sm:$0xf]
        %v1965 = vld [vmem:[%s7 + $0xc] sm:$0xf]
        %v1966 = vld [vmem:[#allocation7] sm:$0x1]
        %v1968 = vlaneseq
        %v1969 = vshrl.u32 %v1968, 7
        %v1970 = vsub.s32 0, %v1969
        %v1971 = vrot.slane %v1966, %v1970
        %v1977 = vunpack.c.l.b16 %v1962
        %v1978 = vunpack.c.l.b16 %v1963
        %v1979 = vunpack.c.l.b16 %v1964
        %v1980 = vunpack.c.l.b16 %v1965
        %v1981 = vpack.c.b16 %v1978, %v1977
        %v1982 = vpack.c.b16 %v1980, %v1979
        %v1985 = vsel %vm640, %v1961, 0
        %1987 = vmatprep.subr.bf16.mxu0 0
        %1988 = vmatpush1.bf16.msra.mxu0 0
        %1989 = vmatprep.subr.bf16.mxu0 0
        %1990 = vmatpush1.bf16.msra.mxu0 0
        %1991 = vmatprep.subr.bf16.mxu0 0
        %1992 = vmatpush1.bf16.msra.mxu0 0
        %1993 = vmatprep.subr.bf16.mxu0 0
        %1994 = vmatpush1.bf16.msra.mxu0 0
        %1995 = vmatprep.subr.bf16.mxu0 0
        %1996 = vmatpush1.bf16.msra.mxu0 0
        %1997 = vmatprep.subr.bf16.mxu0 0
        %1998 = vmatpush1.bf16.msra.mxu0 0
        %1999 = vmatprep.subr.bf16.mxu0 0
        %2000 = vmatpush1.bf16.msra.mxu0 %v1982
        %2001 = vmatprep.subr.bf16.mxu0 0
        %2002 = vmatpush1.bf16.msra.mxu0 %v1981
        %2003 = vmatprep.subr.bf16.mxu0 0
        %2004 = vmatpush2.bf16.msra.mxu0 0
        %2005 = vmatprep.subr.bf16.mxu0 0
        %2006 = vmatpush2.bf16.msra.mxu0 0
        %2007 = vmatprep.subr.bf16.mxu0 0
        %2008 = vmatpush2.bf16.msra.mxu0 0
        %2009 = vmatprep.subr.bf16.mxu0 0
        %2010 = vmatpush2.bf16.msra.mxu0 0
        %2011 = vmatprep.subr.bf16.mxu0 0
        %2012 = vmatpush2.bf16.msra.mxu0 0
        %2013 = vmatprep.subr.bf16.mxu0 0
        %2014 = vmatpush2.bf16.msra.mxu0 0
        %2015 = vmatprep.subr.bf16.mxu0 0
        %2016 = vmatpush2.bf16.msra.mxu0 0
        %2017 = vmatprep.subr.bf16.mxu0 0
        %2018 = vmatpush2.bf16.msra.mxu0 0
        %2019 = vmatprep.mubr.bf16.mxu0 0
        %2020 = vmatmul.mubr.bf16.gmra.mxu0 %v1985
        %v2021 = vpop.f32.mrf.mxu0
        %v2022 = vadd.f32 %v1971, %v2021
        %v2023 = vpop.f32.mrf.mxu0
        %v2024 = vpop.f32.mrf.mxu0
        %v2025 = vpop.f32.mrf.mxu0
        %2026 = vdwg.mxu0
        %v2027 = vadd.f32 %v636, %v2022
        %v2028 = vld [vmem:[#allocation8] sm:$0x1]
        %v2029 = vld [vmem:[#allocation10] sm:$0x1]
        %v2030 = vsel %vm640, %v2027, 0.0
        %2031 = vadd.xlane.f32.xlu0 %v2030
        %v2032 = vpop.xlane.xlu0 %2031
        %v2033 = vmul.f32 %v2032, %v644
        %v2034 = vsub.f32 %v2027, %v2033
        %v2035 = vmul.f32 %v2034, %v2034
        %v2036 = vsel %vm640, %v2035, 0.0
        %2037 = vadd.xlane.f32.xlu0 %v2036
        %v2038 = vpop.xlane.xlu0 %2037
        %v2039 = vmul.f32 %v2038, %v644
        %v2040 = vadd.f32 %v2039, 1e-05
        %v2041 = vrsqrt.pop %v2040
        %v2042 = vmul.f32 %v2034, %v2041
        %v2044 = vlaneseq
        %v2045 = vshrl.u32 %v2044, 7
        %v2046 = vsub.s32 0, %v2045
        %v2047 = vrot.slane %v2028, %v2046
        %v2049 = vmul.f32 %v2042, %v2047
        %v2051 = vlaneseq
        %v2052 = vshrl.u32 %v2051, 7
        %v2053 = vsub.s32 0, %v2052
        %v2054 = vrot.slane %v2029, %v2053
        %v2056 = vadd.f32 %v2049, %v2054
        %v2057 = vpack.c.bf16 %v2056, %v2056
        %v2058 = vld [vmem:[#allocation11] sm:$0xf]
        %v2059 = vld [vmem:[#allocation11 + $0x4] sm:$0xf]
        %v2060 = vld [vmem:[#allocation11 + $0x8] sm:$0xf]
        %v2061 = vld [vmem:[#allocation11 + $0xc] sm:$0xf]
        %v2062 = vld [vmem:[#allocation13] sm:$0x1]
        %v2064 = vlaneseq
        %v2065 = vshrl.u32 %v2064, 7
        %v2066 = vsub.s32 0, %v2065
        %v2067 = vrot.slane %v2062, %v2066
        %v2073 = vunpack.c.l.b16 %v2058
        %v2074 = vunpack.c.l.b16 %v2059
        %v2075 = vunpack.c.l.b16 %v2060
        %v2076 = vunpack.c.l.b16 %v2061
        %v2077 = vpack.c.b16 %v2074, %v2073
        %v2078 = vpack.c.b16 %v2076, %v2075
        %v2082 = vsel %vm640, %v2057, 0
        %2084 = vmatprep.subr.bf16.mxu0 0
        %2085 = vmatpush1.bf16.msra.mxu0 0
        %2086 = vmatprep.subr.bf16.mxu0 0
        %2087 = vmatpush1.bf16.msra.mxu0 0
        %2088 = vmatprep.subr.bf16.mxu0 0
        %2089 = vmatpush1.bf16.msra.mxu0 0
        %2090 = vmatprep.subr.bf16.mxu0 0
        %2091 = vmatpush1.bf16.msra.mxu0 0
        %2092 = vmatprep.subr.bf16.mxu0 0
        %2093 = vmatpush1.bf16.msra.mxu0 0
        %2094 = vmatprep.subr.bf16.mxu0 0
        %2095 = vmatpush1.bf16.msra.mxu0 0
        %2096 = vmatprep.subr.bf16.mxu0 0
        %2097 = vmatpush1.bf16.msra.mxu0 %v2078
        %2098 = vmatprep.subr.bf16.mxu0 0
        %2099 = vmatpush1.bf16.msra.mxu0 %v2077
        %2100 = vmatprep.subr.bf16.mxu0 0
        %2101 = vmatpush2.bf16.msra.mxu0 0
        %2102 = vmatprep.subr.bf16.mxu0 0
        %2103 = vmatpush2.bf16.msra.mxu0 0
        %2104 = vmatprep.subr.bf16.mxu0 0
        %2105 = vmatpush2.bf16.msra.mxu0 0
        %2106 = vmatprep.subr.bf16.mxu0 0
        %2107 = vmatpush2.bf16.msra.mxu0 0
        %2108 = vmatprep.subr.bf16.mxu0 0
        %2109 = vmatpush2.bf16.msra.mxu0 0
        %2110 = vmatprep.subr.bf16.mxu0 0
        %2111 = vmatpush2.bf16.msra.mxu0 0
        %2112 = vmatprep.subr.bf16.mxu0 0
        %2113 = vmatpush2.bf16.msra.mxu0 0
        %2114 = vmatprep.subr.bf16.mxu0 0
        %2115 = vmatpush2.bf16.msra.mxu0 0
        %2116 = vmatprep.mubr.bf16.mxu0 0
        %2117 = vmatmul.mubr.bf16.gmra.mxu0 %v2082
        %v2118 = vpop.f32.mrf.mxu0
        %v2119 = vadd.f32 %v2067, %v2118
        %v2120 = vpop.f32.mrf.mxu0
        %v2121 = vpop.f32.mrf.mxu0
        %v2122 = vpop.f32.mrf.mxu0
        %2123 = vdwg.mxu0
        %v2124 = vmul.f32 %v2119, 0.5
        %v2125 = vmul.f32 %v2119, 0.70710677
        %v2126 = vand.u32 2147483647, %v2125
        %v2127 = vmul.f32 %v2126, 0.3275911
        %v2128 = vadd.f32 %v2127, 1.0
        %v2129 = vrcp.pop %v2128
        %v2130 = vmul.f32 %v2129, 1.0614054
        %v2131 = vadd.f32 %v2130, -1.4531521
        %v2132 = vmul.f32 %v2131, %v2129
        %v2133 = vadd.f32 %v2132, 1.4214138
        %v2134 = vmul.f32 %v2133, %v2129
        %v2135 = vadd.f32 %v2134, -0.28449672
        %v2136 = vmul.f32 %v2135, %v2129
        %v2137 = vadd.f32 %v2136, 0.2548296
        %v2138 = vmul.f32 %v2137, %v2129
        %v2139 = vsub.f32 0.0, %v2126
        %v2140 = vmul.f32 %v2139, %v2126
        %v2141 = vmul.f32 %v2140, 1.442695
        %v2142 = vpow.pop %v2141
        %v2143 = vmul.f32 %v2138, %v2142
        %v2144 = vsub.f32 1.0, %v2143
        %vm2145 = vcmp.lt.f32.partialorder %v2125, 0.0
        %v2146 = vsub.f32 0.0, %v2144
        %v2147 = vsel %vm2145, %v2146, %v2144
        %v2148 = vadd.f32 %v2147, 1.0
        %v2149 = vmul.f32 %v2124, %v2148
        %v2150 = vpack.c.bf16 %v2149, %v2149
        %v2151 = vld [vmem:[%s13] sm:$0xf]
        %v2152 = vld [vmem:[%s13 + $0x4] sm:$0xf]
        %v2153 = vld [vmem:[%s13 + $0x8] sm:$0xf]
        %v2154 = vld [vmem:[%s13 + $0xc] sm:$0xf]
        %v2155 = vld [vmem:[%s13 + $0x10] sm:$0xf]
        %v2156 = vld [vmem:[%s13 + $0x14] sm:$0xf]
        %v2157 = vld [vmem:[%s13 + $0x18] sm:$0xf]
        %v2158 = vld [vmem:[%s13 + $0x1c] sm:$0xf]
        %v2159 = vld [vmem:[%s13 + $0x20] sm:$0xf]
        %v2160 = vld [vmem:[%s13 + $0x24] sm:$0xf]
        %v2161 = vld [vmem:[%s13 + $0x28] sm:$0xf]
        %v2162 = vld [vmem:[%s13 + $0x2c] sm:$0xf]
        %v2163 = vld [vmem:[%s13 + $0x30] sm:$0xf]
        %v2164 = vld [vmem:[%s13 + $0x34] sm:$0xf]
        %v2165 = vld [vmem:[%s13 + $0x38] sm:$0xf]
        %v2166 = vld [vmem:[%s13 + $0x3c] sm:$0xf]
        %v2183 = vunpack.c.l.b16 %v2151
        %v2184 = vunpack.c.l.b16 %v2152
        %v2185 = vunpack.c.l.b16 %v2153
        %v2186 = vunpack.c.l.b16 %v2154
        %v2187 = vunpack.c.l.b16 %v2155
        %v2188 = vunpack.c.l.b16 %v2156
        %v2189 = vunpack.c.l.b16 %v2157
        %v2190 = vunpack.c.l.b16 %v2158
        %v2191 = vunpack.c.l.b16 %v2159
        %v2192 = vunpack.c.l.b16 %v2160
        %v2193 = vunpack.c.l.b16 %v2161
        %v2194 = vunpack.c.l.b16 %v2162
        %v2195 = vunpack.c.l.b16 %v2163
        %v2196 = vunpack.c.l.b16 %v2164
        %v2197 = vunpack.c.l.b16 %v2165
        %v2198 = vunpack.c.l.b16 %v2166
        %v2199 = vpack.c.b16 %v2184, %v2183
        %v2200 = vpack.c.b16 %v2186, %v2185
        %v2201 = vpack.c.b16 %v2188, %v2187
        %v2202 = vpack.c.b16 %v2190, %v2189
        %v2203 = vpack.c.b16 %v2192, %v2191
        %v2204 = vpack.c.b16 %v2194, %v2193
        %v2205 = vpack.c.b16 %v2196, %v2195
        %v2206 = vpack.c.b16 %v2198, %v2197
        %2215 = vmatprep.subr.bf16.mxu0 0
        %2216 = vmatpush1.bf16.msra.mxu0 %v2206
        %2217 = vmatprep.subr.bf16.mxu0 0
        %2218 = vmatpush1.bf16.msra.mxu0 %v2205
        %2219 = vmatprep.subr.bf16.mxu0 0
        %2220 = vmatpush1.bf16.msra.mxu0 %v2204
        %2221 = vmatprep.subr.bf16.mxu0 0
        %2222 = vmatpush1.bf16.msra.mxu0 %v2203
        %2223 = vmatprep.subr.bf16.mxu0 0
        %2224 = vmatpush1.bf16.msra.mxu0 %v2202
        %2225 = vmatprep.subr.bf16.mxu0 0
        %2226 = vmatpush1.bf16.msra.mxu0 %v2201
        %2227 = vmatprep.subr.bf16.mxu0 0
        %2228 = vmatpush1.bf16.msra.mxu0 %v2200
        %2229 = vmatprep.subr.bf16.mxu0 0
        %2230 = vmatpush1.bf16.msra.mxu0 %v2199
        %2231 = vmatprep.subr.bf16.mxu0 0
        %2232 = vmatpush2.bf16.msra.mxu0 0
        %2233 = vmatprep.subr.bf16.mxu0 0
        %2234 = vmatpush2.bf16.msra.mxu0 0
        %2235 = vmatprep.subr.bf16.mxu0 0
        %2236 = vmatpush2.bf16.msra.mxu0 0
        %2237 = vmatprep.subr.bf16.mxu0 0
        %2238 = vmatpush2.bf16.msra.mxu0 0
        %2239 = vmatprep.subr.bf16.mxu0 0
        %2240 = vmatpush2.bf16.msra.mxu0 0
        %2241 = vmatprep.subr.bf16.mxu0 0
        %2242 = vmatpush2.bf16.msra.mxu0 0
        %2243 = vmatprep.subr.bf16.mxu0 0
        %2244 = vmatpush2.bf16.msra.mxu0 0
        %2245 = vmatprep.subr.bf16.mxu0 0
        %2246 = vmatpush2.bf16.msra.mxu0 0
        %2247 = vmatprep.mubr.bf16.mxu0 0
        %2248 = vmatmul.mubr.bf16.gmra.mxu0 %v2150
        %v2249 = vpop.f32.mrf.mxu0
        %v2250 = vadd.f32 0.0, %v2249
        %v2251 = vpop.f32.mrf.mxu0
        %v2252 = vpop.f32.mrf.mxu0
        %v2253 = vpop.f32.mrf.mxu0
        %2254 = vdwg.mxu0
        %v2255 = vadd.f32 %v2027, %v2250
        %v2256 = vld [vmem:[#allocation14] sm:$0x1]
        %v2258 = vlaneseq
        %v2259 = vshrl.u32 %v2258, 7
        %v2260 = vsub.s32 0, %v2259
        %v2261 = vrot.slane %v2256, %v2260
        %v2263 = vadd.f32 %v2255, %v2261
        %2264 = vst.msk [vmem:[%s623] sm:$0xff] %vm640, %v2263
        %s2265 = sand.u32 %s383, 1
        %s2266 = scalar_lea.sflag [#allocation4], %s2265
        %s2267 = sand.u32 %s383, 1
        %s2268 = smul.addr %s2267, 8
        %s2269 = scalar_lea.vmem [#allocation16], %s2268
        // Predicated region
        $region113: #{_block_forward.1} parent=79 // pred_check
          %p2270 = pneg %p393
        $region114: #{_block_forward.1} parent=79 // pred_check_branch
          %2272 = sbr.rel (%p2270) target = $region116
        $region115: #{_block_forward.1} parent=79 // pred_region
          %s2274 = ssub.s32 128, 128
          %2275 = vsyncadd %s2266, %s2274
          %s2276 = sadd.s32 %s39, %s38
          %s2277 = smul.addr %s2276, 128
          %s2278 = scalar_lea.hbm %s15, %s2277
          %s2280 = sshll.u32 %s2269, 4
          %s2281 = int_to_ptr.vmem [resolvable:$true] %s2280
          %2283 = dma.vmem_to_hbm [thread:$0]  %s2281, 128, %s2278, %s2266
        $region116: #{_block_forward.1} parent=79 // pred_fallthru
          _
      $region80: #{_block_forward.1} parent=5 // pred_fallthru
        _
      %p2284 = scmp.le.s32.totalorder 2, %s29
      // Predicated region
      $region117: #{_block_forward.1} parent=5 // pred_check
        %p2285 = pneg %p2284
      $region118: #{_block_forward.1} parent=5 // pred_check_branch
        %2287 = sbr.rel (%p2285) target = $region120
      $region119: #{_block_forward.1} parent=5 // pred_region
        %s2288 = ssub.s32 %s29, 2
        // Predicated region
        $region121: #{_block_forward.1} parent=119 // pred_check
          %p2289 = pneg %p399
        $region122: #{_block_forward.1} parent=119 // pred_check_branch
          %2291 = sbr.rel (%p2289) target = $region124
        $region123: #{_block_forward.1} parent=119 // pred_region
          %s2292 = sand.u32 %s384, 1
          %s2293 = scalar_lea.sflag [#allocation4], %s2292
          %s2294 = sand.u32 %s384, 1
          %s2295 = smul.addr %s2294, 8
          %s2296 = scalar_lea.vmem [#allocation16], %s2295
          %2297 = dma.done %s2293, 128
        $region124: #{_block_forward.1} parent=119 // pred_fallthru
          _
      $region120: #{_block_forward.1} parent=5 // pred_fallthru
        _
    $region6: #{_block_forward.1} parent=1 // loop_footer
      %s33 = sadd.s32 1, %s29
    $region7: #{_block_forward.1} parent=1 // loop_footer_branch
      %28 = sbr.rel target = $region3
    $region8: #{_block_forward.1} parent=1 // loop_exit
      _
    %2298 = vsyncpa [#allocation3], 1
    %s2299 = scalar_lea.sflag [#allocation3], 1
    %2300 = vsyncpa %s2299, 1
    %2301 = vsyncpa [#allocation6], 1
    %2302 = vsyncpa [#allocation9], 1
    %2303 = vsyncpa [#allocation12], 1
    %2304 = vsyncpa [#allocation15], 1
    %2305 = vsyncpa [#allocation4], 1
    %s2306 = scalar_lea.sflag [#allocation4], 1
    %2307 = vsyncpa %s2306, 1

</llo_original>
